<compile_context>
chip_gen: v6e
topology: v6e:2x2x1
jax: 0.10.0
libtpu: 0.0.40
codegen_flags: <defaults>
</compile_context>

<pallas_src>
import functools

import jax
import jax.numpy as jnp
from jax.experimental import pallas as pl
from jax.experimental.pallas import tpu as pltpu


def _round_up(x, m):
    return (x + m - 1) // m * m


# ------------------------------ fused kernel ------------------------------- #

def _enc_unit_last_kernel(res_num, Cin, Cout, C_Q, Ho, Wo, CinP, CoutP,
                          xs_ref, w5_ref, b5_ref, wres_ref, bres_ref,
                          wc_ref, bc_ref, wq_ref, bq_ref,
                          o_ref, fpad_ref, col5_ref, col3_ref):
    """One batch element of EncUnitLast, fully resident in VMEM.

    xs_ref  : (1, 4, Cin, Ho*Wo)  space-to-depth input planes:
              xs[2*pr+pc, ci, y*Wo+x] == x[ci, 2*y+pr, 2*x+pc]
    w5_ref  : (Cout, 25*CinP)     im2col 5x5 weights (K zero-padded per tap)
    wres_ref: (2*res_num, Cout, 9*CoutP)   residual-block 3x3 im2col weights
    wc_ref  : (Cout, 9*CoutP)     final 3x3 im2col weights
    wq_ref  : (C_Q, Cout)         1x1 projection
    b*_ref  : (C, 1)              biases (lane-broadcast columns)
    o_ref   : (1, C_Q, Ho*Wo)
    fpad_ref: (max(Cin,Cout), Ho*Wo + 2*(Wo+1))  flat zero-padded activation
    col5_ref: (25*CinP, Ho*Wo)    im2col operand of the 5x5 conv
    col3_ref: (9*CoutP, Ho*Wo)    im2col operand of the 3x3 convs
    """
    f32 = jnp.float32
    HW = Ho * Wo
    OFF = Wo + 1                       # flat zero margin: covers shifts in [-(Wo+1), Wo+1]

    # Column-validity masks for the +/-1 horizontal taps (hoisted, lane-indexed).
    lane = jax.lax.broadcasted_iota(jnp.int32, (1, HW), 1)
    if Wo & (Wo - 1) == 0:
        xpos = jnp.bitwise_and(lane, Wo - 1)
    else:
        xpos = lane % Wo
    mask_l = xpos >= 1                 # column offset dx = -1 is valid
    mask_r = xpos <= Wo - 2            # column offset dx = +1 is valid

    def shifted_tap(c_rows, dy, dx):
        """(c_rows, HW) view of the activation held in fpad, shifted by (dy, dx)
        rows/cols with zero padding: constant lane-offset slice + wrap mask."""
        s = OFF + dy * Wo + dx
        v = fpad_ref[0:c_rows, s:s + HW]
        if dx == -1:
            v = jnp.where(mask_l, v, 0.0)
        elif dx == 1:
            v = jnp.where(mask_r, v, 0.0)
        return v

    # Zero once: fpad margins and the channel-padding rows of the im2col buffers.
    fpad_ref[...] = jnp.zeros_like(fpad_ref)
    col5_ref[...] = jnp.zeros_like(col5_ref)
    col3_ref[...] = jnp.zeros_like(col3_ref)

    # ---- stage 1: 5x5 / stride 2 / pad 2 conv as ONE matmul (K = 25*CinP) ----
    # Parity plane (pr, pc), tap (ky, kx) = (2*qy + pr, 2*qx + pc):
    #   x_pad[2y+ky, 2x+kx] == plane_{pr,pc}[y + qy - 1, x + qx - 1]   (zero OOB)
    for pr in range(2):
        for pc in range(2):
            fpad_ref[0:Cin, OFF:OFF + HW] = xs_ref[0, 2 * pr + pc].astype(f32)
            for qy in range(3 - pr):
                for qx in range(3 - pc):
                    t = (2 * qy + pr) * 5 + (2 * qx + pc)
                    col5_ref[t * CinP:t * CinP + Cin, :] = shifted_tap(Cin, qy - 1, qx - 1)
    out1 = jnp.dot(w5_ref[...], col5_ref[...],
                   preferred_element_type=f32) + b5_ref[...]            # (Cout, HW)

    # ---- 3x3 / stride 1 / pad 1 conv as ONE matmul (K = 9*CoutP) ----
    def conv3x3(h, wmat, bias):
        fpad_ref[0:Cout, OFF:OFF + HW] = h
        for ky in range(3):
            for kx in range(3):
                t = ky * 3 + kx
                col3_ref[t * CoutP:t * CoutP + Cout, :] = shifted_tap(Cout, ky - 1, kx - 1)
        return jnp.dot(wmat, col3_ref[...], preferred_element_type=f32) + bias

    # ---- residual blocks ----
    out = out1
    for r in range(res_num):
        h = jnp.maximum(conv3x3(out, wres_ref[2 * r], bres_ref[2 * r]), 0.0)
        out = conv3x3(h, wres_ref[2 * r + 1], bres_ref[2 * r + 1]) + out

    # ---- conv1 + skip from out1, then fused 1x1 projection epilogue ----
    out = conv3x3(out, wc_ref[...], bc_ref[...]) + out1
    out = jnp.dot(wq_ref[...], out, preferred_element_type=f32) + bq_ref[...]    # (C_Q, HW)
    o_ref[0] = out.astype(o_ref.dtype)


# ------------------------------- wrapper ----------------------------------- #

def _im2col_weight(w_hwio, cin_padded):
    """HWIO (kh, kw, Cin, Cout) -> (Cout, kh*kw*cin_padded) matching the in-kernel
    im2col row layout (tap-major, channel-minor, channels zero-padded)."""
    kh, kw, cin, cout = w_hwio.shape
    w = w_hwio.reshape(kh * kw, cin, cout)
    w = jnp.pad(w, ((0, 0), (0, cin_padded - cin), (0, 0)))
    return w.reshape(kh * kw * cin_padded, cout).T


def enc_unit_last_pallas(params, x_nchw):
    B, Cin, H, W = x_nchw.shape
    w5, b5 = params["s2f5"]
    Cout = w5.shape[-1]
    res_blocks = params["res_blocks"]
    res_num = len(res_blocks)
    wq, bq = params["s1f1"]
    C_Q = wq.shape[-1]
    assert H % 2 == 0 and W % 2 == 0
    Ho, Wo = H // 2, W // 2
    HW = Ho * Wo
    CinP, CoutP = _round_up(Cin, 8), _round_up(Cout, 8)

    # One-time layout plumbing (tiny): space-to-depth so the stride-2 conv becomes
    # four stride-1 parity planes, already flattened to (Cin, Ho*Wo).
    xs = (x_nchw.reshape(B, Cin, Ho, 2, Wo, 2)
          .transpose(0, 3, 5, 1, 2, 4)
          .reshape(B, 4, Cin, HW))

    # Weights as im2col matrices (Cout, K); biases as (C, 1) lane-broadcast columns.
    w5m = _im2col_weight(w5, CinP)                           # (Cout, 25*CinP)
    b5c = b5.reshape(Cout, 1)
    if res_num > 0:
        wresm = jnp.stack([_im2col_weight(w, CoutP)
                           for blk in res_blocks for (w, _b) in blk])
        bresc = jnp.stack([b.reshape(Cout, 1)
                           for blk in res_blocks for (_w, b) in blk])
    else:
        wresm = jnp.zeros((1, Cout, 9 * CoutP), jnp.float32)
        bresc = jnp.zeros((1, Cout, 1), jnp.float32)
    wc, bc = params["conv1"]
    wcm = _im2col_weight(wc, CoutP)                          # (Cout, 9*CoutP)
    bcc = bc.reshape(Cout, 1)
    wqm = wq.reshape(Cout, C_Q).T                            # (C_Q, Cout)
    bqc = bq.reshape(C_Q, 1)

    kernel = functools.partial(_enc_unit_last_kernel,
                               res_num, Cin, Cout, C_Q, Ho, Wo, CinP, CoutP)
    out_flat = pl.pallas_call(
        kernel,
        out_shape=jax.ShapeDtypeStruct((B, C_Q, HW), x_nchw.dtype),
        grid_spec=pltpu.PrefetchScalarGridSpec(
            num_scalar_prefetch=0,
            grid=(B,),
            in_specs=[
                pl.BlockSpec((1, 4, Cin, HW), lambda i: (i, 0, 0, 0)),
                pl.BlockSpec(w5m.shape, lambda i: (0, 0)),
                pl.BlockSpec(b5c.shape, lambda i: (0, 0)),
                pl.BlockSpec(wresm.shape, lambda i: (0, 0, 0)),
                pl.BlockSpec(bresc.shape, lambda i: (0, 0, 0)),
                pl.BlockSpec(wcm.shape, lambda i: (0, 0)),
                pl.BlockSpec(bcc.shape, lambda i: (0, 0)),
                pl.BlockSpec(wqm.shape, lambda i: (0, 0)),
                pl.BlockSpec(bqc.shape, lambda i: (0, 0)),
            ],
            out_specs=pl.BlockSpec((1, C_Q, HW), lambda i: (i, 0, 0)),
            scratch_shapes=[
                pltpu.VMEM((max(Cin, Cout), HW + 2 * (Wo + 1)), jnp.float32),
                pltpu.VMEM((25 * CinP, HW), jnp.float32),
                pltpu.VMEM((9 * CoutP, HW), jnp.float32),
            ],
        ),
        compiler_params=pltpu.CompilerParams(
            dimension_semantics=("parallel",)),
    )(xs, w5m, b5c, wresm, bresc, wcm, bcc, wqm, bqc)
    return out_flat.reshape(B, C_Q, Ho, Wo)


# ------------------------- parameters & reference --------------------------- #

def _conv_init(key, kh, kw, cin, cout):
    """Deterministic synthetic init, PyTorch-Conv2d-style uniform bounds.
    Weights in HWIO layout, bias (cout,)."""
    k1, k2 = jax.random.split(key)
    bound = 1.0 / (cin * kh * kw) ** 0.5
    w = jax.random.uniform(k1, (kh, kw, cin, cout), jnp.float32, -bound, bound)
    b = jax.random.uniform(k2, (cout,), jnp.float32, -bound, bound)
    return w, b


def init_enc_unit_last(key, in_ch, out_ch, res_num, C_Q):
    keys = jax.random.split(key, 3 + 2 * res_num)
    ki = iter(keys)
    return {
        "s2f5": _conv_init(next(ki), 5, 5, in_ch, out_ch),
        "res_blocks": [
            (_conv_init(next(ki), 3, 3, out_ch, out_ch),
             _conv_init(next(ki), 3, 3, out_ch, out_ch))
            for _ in range(res_num)
        ],
        "conv1": _conv_init(next(ki), 3, 3, out_ch, out_ch),
        "s1f1": _conv_init(next(ki), 1, 1, out_ch, C_Q),
    }


def _ref_conv(x, w, b, stride, pad):
    y = jax.lax.conv_general_dilated(
        x, w, window_strides=(stride, stride),
        padding=[(pad, pad), (pad, pad)],
        dimension_numbers=("NCHW", "HWIO", "NCHW"))
    return y + b.reshape(1, -1, 1, 1)


def enc_unit_last_reference(params, x):
    w5, b5 = params["s2f5"]
    out1 = _ref_conv(x, w5, b5, 2, 2)
    out = out1
    for (wa, ba), (wb, bb) in params["res_blocks"]:
        h = jnp.maximum(_ref_conv(out, wa, ba, 1, 1), 0.0)
        out = _ref_conv(h, wb, bb, 1, 1) + out
    wc, bc = params["conv1"]
    out = _ref_conv(out, wc, bc, 1, 1) + out1
    wq, bq = params["s1f1"]
    out = _ref_conv(out, wq, bq, 1, 0)
    return out


# --------------------------------- main ------------------------------------ #

if __name__ == "__main__":
    # Module config: EncUnitLast(in_ch=4, out_ch=8, res_num=2, C_Q=4)
    in_ch, out_ch, res_num, C_Q = 4, 8, 2, 4
    B, H, W = 2, 16, 16

    key = jax.random.PRNGKey(0)
    kx, kp = jax.random.split(key)
    x = jax.random.normal(kx, (B, in_ch, H, W), jnp.float32)       # PyTorch-style NCHW
    params = init_enc_unit_last(kp, in_ch, out_ch, res_num, C_Q)

    fwd = jax.jit(enc_unit_last_pallas)
    out = jax.block_until_ready(fwd(params, x))                    # (B, C_Q, H//2, W//2)
    assert out.shape == (B, C_Q, H // 2, W // 2), out.shape

    ref = jax.block_until_ready(enc_unit_last_reference(params, x))
    max_err = float(jnp.max(jnp.abs(out - ref)))
    assert jnp.allclose(out, ref, rtol=1e-3, atol=1e-3), max_err

    print("KERNEL_OK")
</pallas_src>

<mosaic_0001>
module attributes {stable_mosaic.version = 11 : i64} {
  func.func @_enc_unit_last_kernel(%arg0: i32, %arg1: memref<1x4x4x64xf32, #tpu.memory_space<vmem>>, %arg2: memref<8x200xf32, #tpu.memory_space<vmem>>, %arg3: memref<8x1xf32, #tpu.memory_space<vmem>>, %arg4: memref<4x8x72xf32, #tpu.memory_space<vmem>>, %arg5: memref<4x8x1xf32, #tpu.memory_space<vmem>>, %arg6: memref<8x72xf32, #tpu.memory_space<vmem>>, %arg7: memref<8x1xf32, #tpu.memory_space<vmem>>, %arg8: memref<4x8xf32, #tpu.memory_space<vmem>>, %arg9: memref<4x1xf32, #tpu.memory_space<vmem>>, %arg10: memref<1x4x64xf32, #tpu.memory_space<vmem>>, %arg11: memref<8x82xf32, #tpu.memory_space<vmem>>, %arg12: memref<200x64xf32, #tpu.memory_space<vmem>>, %arg13: memref<72x64xf32, #tpu.memory_space<vmem>>) attributes {dimension_semantics = [#tpu.dimension_semantics<parallel>], iteration_bounds = array<i64: 2>, scalar_prefetch = 0 : i64, scratch_operands = 3 : i64, tpu.core_type = #tpu.core_type<tc>, window_params = [{transform_indices = @transform_0, window_bounds = array<i64: 1, 4, 4, 64>}, {pipeline_mode = #tpu.pipeline_mode<synchronous>, transform_indices = @transform_1, window_bounds = array<i64: 8, 200>}, {pipeline_mode = #tpu.pipeline_mode<synchronous>, transform_indices = @transform_2, window_bounds = array<i64: 8, 1>}, {pipeline_mode = #tpu.pipeline_mode<synchronous>, transform_indices = @transform_3, window_bounds = array<i64: 4, 8, 72>}, {pipeline_mode = #tpu.pipeline_mode<synchronous>, transform_indices = @transform_4, window_bounds = array<i64: 4, 8, 1>}, {pipeline_mode = #tpu.pipeline_mode<synchronous>, transform_indices = @transform_5, window_bounds = array<i64: 8, 72>}, {pipeline_mode = #tpu.pipeline_mode<synchronous>, transform_indices = @transform_6, window_bounds = array<i64: 8, 1>}, {pipeline_mode = #tpu.pipeline_mode<synchronous>, transform_indices = @transform_7, window_bounds = array<i64: 4, 8>}, {pipeline_mode = #tpu.pipeline_mode<synchronous>, transform_indices = @transform_8, window_bounds = array<i64: 4, 1>}, {transform_indices = @transform_9, window_bounds = array<i64: 1, 4, 64>}]} {
    %0 = tpu.iota {dimensions = array<i32: 1>} : vector<1x64xi32>
    %c7_i32 = arith.constant 7 : i32
    %1 = vector.broadcast %c7_i32 : i32 to vector<1x64xi32>
    %2 = arith.andi %0, %1 : vector<1x64xi32>
    %c1_i32 = arith.constant 1 : i32
    %3 = vector.broadcast %c1_i32 : i32 to vector<1x64xi32>
    %4 = arith.cmpi sge, %2, %3 : vector<1x64xi32>
    %c6_i32 = arith.constant 6 : i32
    %5 = vector.broadcast %c6_i32 : i32 to vector<1x64xi32>
    %6 = arith.cmpi sle, %2, %5 : vector<1x64xi32>
    %cst = arith.constant 0.000000e+00 : f32
    %7 = vector.broadcast %cst : f32 to vector<8x82xf32>
    %c0 = arith.constant 0 : index
    %c0_0 = arith.constant 0 : index
    %8 = vector.load %arg11[%c0, %c0_0] : memref<8x82xf32, #tpu.memory_space<vmem>>, vector<8x82xf32>
    tpu.vector_store %arg11[%c0, %c0_0], %7 {strides = array<i32>} : memref<8x82xf32, #tpu.memory_space<vmem>>, vector<8x82xf32>,
    %cst_1 = arith.constant 0.000000e+00 : f32
    %9 = vector.broadcast %cst_1 : f32 to vector<200x64xf32>
    %c0_2 = arith.constant 0 : index
    %c0_3 = arith.constant 0 : index
    %10 = vector.load %arg12[%c0_2, %c0_3] : memref<200x64xf32, #tpu.memory_space<vmem>>, vector<200x64xf32>
    tpu.vector_store %arg12[%c0_2, %c0_3], %9 {strides = array<i32>} : memref<200x64xf32, #tpu.memory_space<vmem>>, vector<200x64xf32>,
    %cst_4 = arith.constant 0.000000e+00 : f32
    %11 = vector.broadcast %cst_4 : f32 to vector<72x64xf32>
    %c0_5 = arith.constant 0 : index
    %c0_6 = arith.constant 0 : index
    %12 = vector.load %arg13[%c0_5, %c0_6] : memref<72x64xf32, #tpu.memory_space<vmem>>, vector<72x64xf32>
    tpu.vector_store %arg13[%c0_5, %c0_6], %11 {strides = array<i32>} : memref<72x64xf32, #tpu.memory_space<vmem>>, vector<72x64xf32>,
    %c0_7 = arith.constant 0 : index
    %c0_8 = arith.constant 0 : index
    %c0_9 = arith.constant 0 : index
    %c0_10 = arith.constant 0 : index
    %13 = vector.load %arg1[%c0_7, %c0_8, %c0_9, %c0_10] : memref<1x4x4x64xf32, #tpu.memory_space<vmem>>, vector<1x1x4x64xf32>
    %14 = vector.shape_cast %13 : vector<1x1x4x64xf32> to vector<4x64xf32>
    %c0_11 = arith.constant 0 : index
    %c9 = arith.constant 9 : index
    %15 = vector.load %arg11[%c0_11, %c9] : memref<8x82xf32, #tpu.memory_space<vmem>>, vector<4x64xf32>
    tpu.vector_store %arg11[%c0_11, %c9], %14 {strides = array<i32>} : memref<8x82xf32, #tpu.memory_space<vmem>>, vector<4x64xf32>,
    %c0_12 = arith.constant 0 : index
    %c0_13 = arith.constant 0 : index
    %16 = vector.load %arg11[%c0_12, %c0_13] : memref<8x82xf32, #tpu.memory_space<vmem>>, vector<4x64xf32>
    %cst_14 = arith.constant 0.000000e+00 : f32
    %17 = vector.shape_cast %4 : vector<1x64xi1> to vector<1x64xi1>
    %18 = vector.broadcast %17 : vector<1x64xi1> to vector<4x64xi1>
    %19 = vector.broadcast %cst_14 : f32 to vector<4x64xf32>
    %20 = arith.select %18, %16, %19 : vector<4x64xi1>, vector<4x64xf32>
    %c0_15 = arith.constant 0 : index
    %c0_16 = arith.constant 0 : index
    %21 = vector.load %arg12[%c0_15, %c0_16] : memref<200x64xf32, #tpu.memory_space<vmem>>, vector<4x64xf32>
    tpu.vector_store %arg12[%c0_15, %c0_16], %20 {strides = array<i32>} : memref<200x64xf32, #tpu.memory_space<vmem>>, vector<4x64xf32>,
    %c0_17 = arith.constant 0 : index
    %c1 = arith.constant 1 : index
    %22 = vector.load %arg11[%c0_17, %c1] : memref<8x82xf32, #tpu.memory_space<vmem>>, vector<4x64xf32>
    %c16 = arith.constant 16 : index
    %c0_18 = arith.constant 0 : index
    %23 = vector.load %arg12[%c16, %c0_18] : memref<200x64xf32, #tpu.memory_space<vmem>>, vector<4x64xf32>
    tpu.vector_store %arg12[%c16, %c0_18], %22 {strides = array<i32>} : memref<200x64xf32, #tpu.memory_space<vmem>>, vector<4x64xf32>,
    %c0_19 = arith.constant 0 : index
    %c2 = arith.constant 2 : index
    %24 = vector.load %arg11[%c0_19, %c2] : memref<8x82xf32, #tpu.memory_space<vmem>>, vector<4x64xf32>
    %cst_20 = arith.constant 0.000000e+00 : f32
    %25 = vector.shape_cast %6 : vector<1x64xi1> to vector<1x64xi1>
    %26 = vector.broadcast %25 : vector<1x64xi1> to vector<4x64xi1>
    %27 = vector.broadcast %cst_20 : f32 to vector<4x64xf32>
    %28 = arith.select %26, %24, %27 : vector<4x64xi1>, vector<4x64xf32>
    %c32 = arith.constant 32 : index
    %c0_21 = arith.constant 0 : index
    %29 = vector.load %arg12[%c32, %c0_21] : memref<200x64xf32, #tpu.memory_space<vmem>>, vector<4x64xf32>
    tpu.vector_store %arg12[%c32, %c0_21], %28 {strides = array<i32>} : memref<200x64xf32, #tpu.memory_space<vmem>>, vector<4x64xf32>,
    %c0_22 = arith.constant 0 : index
    %c8 = arith.constant 8 : index
    %30 = vector.load %arg11[%c0_22, %c8] : memref<8x82xf32, #tpu.memory_space<vmem>>, vector<4x64xf32>
    %cst_23 = arith.constant 0.000000e+00 : f32
    %31 = vector.shape_cast %4 : vector<1x64xi1> to vector<1x64xi1>
    %32 = vector.broadcast %31 : vector<1x64xi1> to vector<4x64xi1>
    %33 = vector.broadcast %cst_23 : f32 to vector<4x64xf32>
    %34 = arith.select %32, %30, %33 : vector<4x64xi1>, vector<4x64xf32>
    %c80 = arith.constant 80 : index
    %c0_24 = arith.constant 0 : index
    %35 = vector.load %arg12[%c80, %c0_24] : memref<200x64xf32, #tpu.memory_space<vmem>>, vector<4x64xf32>
    tpu.vector_store %arg12[%c80, %c0_24], %34 {strides = array<i32>} : memref<200x64xf32, #tpu.memory_space<vmem>>, vector<4x64xf32>,
    %c0_25 = arith.constant 0 : index
    %c9_26 = arith.constant 9 : index
    %36 = vector.load %arg11[%c0_25, %c9_26] : memref<8x82xf32, #tpu.memory_space<vmem>>, vector<4x64xf32>
    %c96 = arith.constant 96 : index
    %c0_27 = arith.constant 0 : index
    %37 = vector.load %arg12[%c96, %c0_27] : memref<200x64xf32, #tpu.memory_space<vmem>>, vector<4x64xf32>
    tpu.vector_store %arg12[%c96, %c0_27], %36 {strides = array<i32>} : memref<200x64xf32, #tpu.memory_space<vmem>>, vector<4x64xf32>,
    %c0_28 = arith.constant 0 : index
    %c10 = arith.constant 10 : index
    %38 = vector.load %arg11[%c0_28, %c10] : memref<8x82xf32, #tpu.memory_space<vmem>>, vector<4x64xf32>
    %cst_29 = arith.constant 0.000000e+00 : f32
    %39 = vector.shape_cast %6 : vector<1x64xi1> to vector<1x64xi1>
    %40 = vector.broadcast %39 : vector<1x64xi1> to vector<4x64xi1>
    %41 = vector.broadcast %cst_29 : f32 to vector<4x64xf32>
    %42 = arith.select %40, %38, %41 : vector<4x64xi1>, vector<4x64xf32>
    %c112 = arith.constant 112 : index
    %c0_30 = arith.constant 0 : index
    %43 = vector.load %arg12[%c112, %c0_30] : memref<200x64xf32, #tpu.memory_space<vmem>>, vector<4x64xf32>
    tpu.vector_store %arg12[%c112, %c0_30], %42 {strides = array<i32>} : memref<200x64xf32, #tpu.memory_space<vmem>>, vector<4x64xf32>,
    %c0_31 = arith.constant 0 : index
    %c16_32 = arith.constant 16 : index
    %44 = vector.load %arg11[%c0_31, %c16_32] : memref<8x82xf32, #tpu.memory_space<vmem>>, vector<4x64xf32>
    %cst_33 = arith.constant 0.000000e+00 : f32
    %45 = vector.shape_cast %4 : vector<1x64xi1> to vector<1x64xi1>
    %46 = vector.broadcast %45 : vector<1x64xi1> to vector<4x64xi1>
    %47 = vector.broadcast %cst_33 : f32 to vector<4x64xf32>
    %48 = arith.select %46, %44, %47 : vector<4x64xi1>, vector<4x64xf32>
    %c160 = arith.constant 160 : index
    %c0_34 = arith.constant 0 : index
    %49 = vector.load %arg12[%c160, %c0_34] : memref<200x64xf32, #tpu.memory_space<vmem>>, vector<4x64xf32>
    tpu.vector_store %arg12[%c160, %c0_34], %48 {strides = array<i32>} : memref<200x64xf32, #tpu.memory_space<vmem>>, vector<4x64xf32>,
    %c0_35 = arith.constant 0 : index
    %c17 = arith.constant 17 : index
    %50 = vector.load %arg11[%c0_35, %c17] : memref<8x82xf32, #tpu.memory_space<vmem>>, vector<4x64xf32>
    %c176 = arith.constant 176 : index
    %c0_36 = arith.constant 0 : index
    %51 = vector.load %arg12[%c176, %c0_36] : memref<200x64xf32, #tpu.memory_space<vmem>>, vector<4x64xf32>
    tpu.vector_store %arg12[%c176, %c0_36], %50 {strides = array<i32>} : memref<200x64xf32, #tpu.memory_space<vmem>>, vector<4x64xf32>,
    %c0_37 = arith.constant 0 : index
    %c18 = arith.constant 18 : index
    %52 = vector.load %arg11[%c0_37, %c18] : memref<8x82xf32, #tpu.memory_space<vmem>>, vector<4x64xf32>
    %cst_38 = arith.constant 0.000000e+00 : f32
    %53 = vector.shape_cast %6 : vector<1x64xi1> to vector<1x64xi1>
    %54 = vector.broadcast %53 : vector<1x64xi1> to vector<4x64xi1>
    %55 = vector.broadcast %cst_38 : f32 to vector<4x64xf32>
    %56 = arith.select %54, %52, %55 : vector<4x64xi1>, vector<4x64xf32>
    %c192 = arith.constant 192 : index
    %c0_39 = arith.constant 0 : index
    %57 = vector.load %arg12[%c192, %c0_39] : memref<200x64xf32, #tpu.memory_space<vmem>>, vector<4x64xf32>
    tpu.vector_store %arg12[%c192, %c0_39], %56 {strides = array<i32>} : memref<200x64xf32, #tpu.memory_space<vmem>>, vector<4x64xf32>,
    %c0_40 = arith.constant 0 : index
    %c1_41 = arith.constant 1 : index
    %c0_42 = arith.constant 0 : index
    %c0_43 = arith.constant 0 : index
    %58 = vector.load %arg1[%c0_40, %c1_41, %c0_42, %c0_43] : memref<1x4x4x64xf32, #tpu.memory_space<vmem>>, vector<1x1x4x64xf32>
    %59 = vector.shape_cast %58 : vector<1x1x4x64xf32> to vector<4x64xf32>
    %c0_44 = arith.constant 0 : index
    %c9_45 = arith.constant 9 : index
    %60 = vector.load %arg11[%c0_44, %c9_45] : memref<8x82xf32, #tpu.memory_space<vmem>>, vector<4x64xf32>
    tpu.vector_store %arg11[%c0_44, %c9_45], %59 {strides = array<i32>} : memref<8x82xf32, #tpu.memory_space<vmem>>, vector<4x64xf32>,
    %c0_46 = arith.constant 0 : index
    %c0_47 = arith.constant 0 : index
    %61 = vector.load %arg11[%c0_46, %c0_47] : memref<8x82xf32, #tpu.memory_space<vmem>>, vector<4x64xf32>
    %cst_48 = arith.constant 0.000000e+00 : f32
    %62 = vector.shape_cast %4 : vector<1x64xi1> to vector<1x64xi1>
    %63 = vector.broadcast %62 : vector<1x64xi1> to vector<4x64xi1>
    %64 = vector.broadcast %cst_48 : f32 to vector<4x64xf32>
    %65 = arith.select %63, %61, %64 : vector<4x64xi1>, vector<4x64xf32>
    %c8_49 = arith.constant 8 : index
    %c0_50 = arith.constant 0 : index
    %66 = vector.load %arg12[%c8_49, %c0_50] : memref<200x64xf32, #tpu.memory_space<vmem>>, vector<4x64xf32>
    tpu.vector_store %arg12[%c8_49, %c0_50], %65 {strides = array<i32>} : memref<200x64xf32, #tpu.memory_space<vmem>>, vector<4x64xf32>,
    %c0_51 = arith.constant 0 : index
    %c1_52 = arith.constant 1 : index
    %67 = vector.load %arg11[%c0_51, %c1_52] : memref<8x82xf32, #tpu.memory_space<vmem>>, vector<4x64xf32>
    %c24 = arith.constant 24 : index
    %c0_53 = arith.constant 0 : index
    %68 = vector.load %arg12[%c24, %c0_53] : memref<200x64xf32, #tpu.memory_space<vmem>>, vector<4x64xf32>
    tpu.vector_store %arg12[%c24, %c0_53], %67 {strides = array<i32>} : memref<200x64xf32, #tpu.memory_space<vmem>>, vector<4x64xf32>,
    %c0_54 = arith.constant 0 : index
    %c8_55 = arith.constant 8 : index
    %69 = vector.load %arg11[%c0_54, %c8_55] : memref<8x82xf32, #tpu.memory_space<vmem>>, vector<4x64xf32>
    %cst_56 = arith.constant 0.000000e+00 : f32
    %70 = vector.shape_cast %4 : vector<1x64xi1> to vector<1x64xi1>
    %71 = vector.broadcast %70 : vector<1x64xi1> to vector<4x64xi1>
    %72 = vector.broadcast %cst_56 : f32 to vector<4x64xf32>
    %73 = arith.select %71, %69, %72 : vector<4x64xi1>, vector<4x64xf32>
    %c88 = arith.constant 88 : index
    %c0_57 = arith.constant 0 : index
    %74 = vector.load %arg12[%c88, %c0_57] : memref<200x64xf32, #tpu.memory_space<vmem>>, vector<4x64xf32>
    tpu.vector_store %arg12[%c88, %c0_57], %73 {strides = array<i32>} : memref<200x64xf32, #tpu.memory_space<vmem>>, vector<4x64xf32>,
    %c0_58 = arith.constant 0 : index
    %c9_59 = arith.constant 9 : index
    %75 = vector.load %arg11[%c0_58, %c9_59] : memref<8x82xf32, #tpu.memory_space<vmem>>, vector<4x64xf32>
    %c104 = arith.constant 104 : index
    %c0_60 = arith.constant 0 : index
    %76 = vector.load %arg12[%c104, %c0_60] : memref<200x64xf32, #tpu.memory_space<vmem>>, vector<4x64xf32>
    tpu.vector_store %arg12[%c104, %c0_60], %75 {strides = array<i32>} : memref<200x64xf32, #tpu.memory_space<vmem>>, vector<4x64xf32>,
    %c0_61 = arith.constant 0 : index
    %c16_62 = arith.constant 16 : index
    %77 = vector.load %arg11[%c0_61, %c16_62] : memref<8x82xf32, #tpu.memory_space<vmem>>, vector<4x64xf32>
    %cst_63 = arith.constant 0.000000e+00 : f32
    %78 = vector.shape_cast %4 : vector<1x64xi1> to vector<1x64xi1>
    %79 = vector.broadcast %78 : vector<1x64xi1> to vector<4x64xi1>
    %80 = vector.broadcast %cst_63 : f32 to vector<4x64xf32>
    %81 = arith.select %79, %77, %80 : vector<4x64xi1>, vector<4x64xf32>
    %c168 = arith.constant 168 : index
    %c0_64 = arith.constant 0 : index
    %82 = vector.load %arg12[%c168, %c0_64] : memref<200x64xf32, #tpu.memory_space<vmem>>, vector<4x64xf32>
    tpu.vector_store %arg12[%c168, %c0_64], %81 {strides = array<i32>} : memref<200x64xf32, #tpu.memory_space<vmem>>, vector<4x64xf32>,
    %c0_65 = arith.constant 0 : index
    %c17_66 = arith.constant 17 : index
    %83 = vector.load %arg11[%c0_65, %c17_66] : memref<8x82xf32, #tpu.memory_space<vmem>>, vector<4x64xf32>
    %c184 = arith.constant 184 : index
    %c0_67 = arith.constant 0 : index
    %84 = vector.load %arg12[%c184, %c0_67] : memref<200x64xf32, #tpu.memory_space<vmem>>, vector<4x64xf32>
    tpu.vector_store %arg12[%c184, %c0_67], %83 {strides = array<i32>} : memref<200x64xf32, #tpu.memory_space<vmem>>, vector<4x64xf32>,
    %c0_68 = arith.constant 0 : index
    %c2_69 = arith.constant 2 : index
    %c0_70 = arith.constant 0 : index
    %c0_71 = arith.constant 0 : index
    %85 = vector.load %arg1[%c0_68, %c2_69, %c0_70, %c0_71] : memref<1x4x4x64xf32, #tpu.memory_space<vmem>>, vector<1x1x4x64xf32>
    %86 = vector.shape_cast %85 : vector<1x1x4x64xf32> to vector<4x64xf32>
    %c0_72 = arith.constant 0 : index
    %c9_73 = arith.constant 9 : index
    %87 = vector.load %arg11[%c0_72, %c9_73] : memref<8x82xf32, #tpu.memory_space<vmem>>, vector<4x64xf32>
    tpu.vector_store %arg11[%c0_72, %c9_73], %86 {strides = array<i32>} : memref<8x82xf32, #tpu.memory_space<vmem>>, vector<4x64xf32>,
    %c0_74 = arith.constant 0 : index
    %c0_75 = arith.constant 0 : index
    %88 = vector.load %arg11[%c0_74, %c0_75] : memref<8x82xf32, #tpu.memory_space<vmem>>, vector<4x64xf32>
    %cst_76 = arith.constant 0.000000e+00 : f32
    %89 = vector.shape_cast %4 : vector<1x64xi1> to vector<1x64xi1>
    %90 = vector.broadcast %89 : vector<1x64xi1> to vector<4x64xi1>
    %91 = vector.broadcast %cst_76 : f32 to vector<4x64xf32>
    %92 = arith.select %90, %88, %91 : vector<4x64xi1>, vector<4x64xf32>
    %c40 = arith.constant 40 : index
    %c0_77 = arith.constant 0 : index
    %93 = vector.load %arg12[%c40, %c0_77] : memref<200x64xf32, #tpu.memory_space<vmem>>, vector<4x64xf32>
    tpu.vector_store %arg12[%c40, %c0_77], %92 {strides = array<i32>} : memref<200x64xf32, #tpu.memory_space<vmem>>, vector<4x64xf32>,
    %c0_78 = arith.constant 0 : index
    %c1_79 = arith.constant 1 : index
    %94 = vector.load %arg11[%c0_78, %c1_79] : memref<8x82xf32, #tpu.memory_space<vmem>>, vector<4x64xf32>
    %c56 = arith.constant 56 : index
    %c0_80 = arith.constant 0 : index
    %95 = vector.load %arg12[%c56, %c0_80] : memref<200x64xf32, #tpu.memory_space<vmem>>, vector<4x64xf32>
    tpu.vector_store %arg12[%c56, %c0_80], %94 {strides = array<i32>} : memref<200x64xf32, #tpu.memory_space<vmem>>, vector<4x64xf32>,
    %c0_81 = arith.constant 0 : index
    %c2_82 = arith.constant 2 : index
    %96 = vector.load %arg11[%c0_81, %c2_82] : memref<8x82xf32, #tpu.memory_space<vmem>>, vector<4x64xf32>
    %cst_83 = arith.constant 0.000000e+00 : f32
    %97 = vector.shape_cast %6 : vector<1x64xi1> to vector<1x64xi1>
    %98 = vector.broadcast %97 : vector<1x64xi1> to vector<4x64xi1>
    %99 = vector.broadcast %cst_83 : f32 to vector<4x64xf32>
    %100 = arith.select %98, %96, %99 : vector<4x64xi1>, vector<4x64xf32>
    %c72 = arith.constant 72 : index
    %c0_84 = arith.constant 0 : index
    %101 = vector.load %arg12[%c72, %c0_84] : memref<200x64xf32, #tpu.memory_space<vmem>>, vector<4x64xf32>
    tpu.vector_store %arg12[%c72, %c0_84], %100 {strides = array<i32>} : memref<200x64xf32, #tpu.memory_space<vmem>>, vector<4x64xf32>,
    %c0_85 = arith.constant 0 : index
    %c8_86 = arith.constant 8 : index
    %102 = vector.load %arg11[%c0_85, %c8_86] : memref<8x82xf32, #tpu.memory_space<vmem>>, vector<4x64xf32>
    %cst_87 = arith.constant 0.000000e+00 : f32
    %103 = vector.shape_cast %4 : vector<1x64xi1> to vector<1x64xi1>
    %104 = vector.broadcast %103 : vector<1x64xi1> to vector<4x64xi1>
    %105 = vector.broadcast %cst_87 : f32 to vector<4x64xf32>
    %106 = arith.select %104, %102, %105 : vector<4x64xi1>, vector<4x64xf32>
    %c120 = arith.constant 120 : index
    %c0_88 = arith.constant 0 : index
    %107 = vector.load %arg12[%c120, %c0_88] : memref<200x64xf32, #tpu.memory_space<vmem>>, vector<4x64xf32>
    tpu.vector_store %arg12[%c120, %c0_88], %106 {strides = array<i32>} : memref<200x64xf32, #tpu.memory_space<vmem>>, vector<4x64xf32>,
    %c0_89 = arith.constant 0 : index
    %c9_90 = arith.constant 9 : index
    %108 = vector.load %arg11[%c0_89, %c9_90] : memref<8x82xf32, #tpu.memory_space<vmem>>, vector<4x64xf32>
    %c136 = arith.constant 136 : index
    %c0_91 = arith.constant 0 : index
    %109 = vector.load %arg12[%c136, %c0_91] : memref<200x64xf32, #tpu.memory_space<vmem>>, vector<4x64xf32>
    tpu.vector_store %arg12[%c136, %c0_91], %108 {strides = array<i32>} : memref<200x64xf32, #tpu.memory_space<vmem>>, vector<4x64xf32>,
    %c0_92 = arith.constant 0 : index
    %c10_93 = arith.constant 10 : index
    %110 = vector.load %arg11[%c0_92, %c10_93] : memref<8x82xf32, #tpu.memory_space<vmem>>, vector<4x64xf32>
    %cst_94 = arith.constant 0.000000e+00 : f32
    %111 = vector.shape_cast %6 : vector<1x64xi1> to vector<1x64xi1>
    %112 = vector.broadcast %111 : vector<1x64xi1> to vector<4x64xi1>
    %113 = vector.broadcast %cst_94 : f32 to vector<4x64xf32>
    %114 = arith.select %112, %110, %113 : vector<4x64xi1>, vector<4x64xf32>
    %c152 = arith.constant 152 : index
    %c0_95 = arith.constant 0 : index
    %115 = vector.load %arg12[%c152, %c0_95] : memref<200x64xf32, #tpu.memory_space<vmem>>, vector<4x64xf32>
    tpu.vector_store %arg12[%c152, %c0_95], %114 {strides = array<i32>} : memref<200x64xf32, #tpu.memory_space<vmem>>, vector<4x64xf32>,
    %c0_96 = arith.constant 0 : index
    %c3 = arith.constant 3 : index
    %c0_97 = arith.constant 0 : index
    %c0_98 = arith.constant 0 : index
    %116 = vector.load %arg1[%c0_96, %c3, %c0_97, %c0_98] : memref<1x4x4x64xf32, #tpu.memory_space<vmem>>, vector<1x1x4x64xf32>
    %117 = vector.shape_cast %116 : vector<1x1x4x64xf32> to vector<4x64xf32>
    %c0_99 = arith.constant 0 : index
    %c9_100 = arith.constant 9 : index
    %118 = vector.load %arg11[%c0_99, %c9_100] : memref<8x82xf32, #tpu.memory_space<vmem>>, vector<4x64xf32>
    tpu.vector_store %arg11[%c0_99, %c9_100], %117 {strides = array<i32>} : memref<8x82xf32, #tpu.memory_space<vmem>>, vector<4x64xf32>,
    %c0_101 = arith.constant 0 : index
    %c0_102 = arith.constant 0 : index
    %119 = vector.load %arg11[%c0_101, %c0_102] : memref<8x82xf32, #tpu.memory_space<vmem>>, vector<4x64xf32>
    %cst_103 = arith.constant 0.000000e+00 : f32
    %120 = vector.shape_cast %4 : vector<1x64xi1> to vector<1x64xi1>
    %121 = vector.broadcast %120 : vector<1x64xi1> to vector<4x64xi1>
    %122 = vector.broadcast %cst_103 : f32 to vector<4x64xf32>
    %123 = arith.select %121, %119, %122 : vector<4x64xi1>, vector<4x64xf32>
    %c48 = arith.constant 48 : index
    %c0_104 = arith.constant 0 : index
    %124 = vector.load %arg12[%c48, %c0_104] : memref<200x64xf32, #tpu.memory_space<vmem>>, vector<4x64xf32>
    tpu.vector_store %arg12[%c48, %c0_104], %123 {strides = array<i32>} : memref<200x64xf32, #tpu.memory_space<vmem>>, vector<4x64xf32>,
    %c0_105 = arith.constant 0 : index
    %c1_106 = arith.constant 1 : index
    %125 = vector.load %arg11[%c0_105, %c1_106] : memref<8x82xf32, #tpu.memory_space<vmem>>, vector<4x64xf32>
    %c64 = arith.constant 64 : index
    %c0_107 = arith.constant 0 : index
    %126 = vector.load %arg12[%c64, %c0_107] : memref<200x64xf32, #tpu.memory_space<vmem>>, vector<4x64xf32>
    tpu.vector_store %arg12[%c64, %c0_107], %125 {strides = array<i32>} : memref<200x64xf32, #tpu.memory_space<vmem>>, vector<4x64xf32>,
    %c0_108 = arith.constant 0 : index
    %c8_109 = arith.constant 8 : index
    %127 = vector.load %arg11[%c0_108, %c8_109] : memref<8x82xf32, #tpu.memory_space<vmem>>, vector<4x64xf32>
    %cst_110 = arith.constant 0.000000e+00 : f32
    %128 = vector.shape_cast %4 : vector<1x64xi1> to vector<1x64xi1>
    %129 = vector.broadcast %128 : vector<1x64xi1> to vector<4x64xi1>
    %130 = vector.broadcast %cst_110 : f32 to vector<4x64xf32>
    %131 = arith.select %129, %127, %130 : vector<4x64xi1>, vector<4x64xf32>
    %c128 = arith.constant 128 : index
    %c0_111 = arith.constant 0 : index
    %132 = vector.load %arg12[%c128, %c0_111] : memref<200x64xf32, #tpu.memory_space<vmem>>, vector<4x64xf32>
    tpu.vector_store %arg12[%c128, %c0_111], %131 {strides = array<i32>} : memref<200x64xf32, #tpu.memory_space<vmem>>, vector<4x64xf32>,
    %c0_112 = arith.constant 0 : index
    %c9_113 = arith.constant 9 : index
    %133 = vector.load %arg11[%c0_112, %c9_113] : memref<8x82xf32, #tpu.memory_space<vmem>>, vector<4x64xf32>
    %c144 = arith.constant 144 : index
    %c0_114 = arith.constant 0 : index
    %134 = vector.load %arg12[%c144, %c0_114] : memref<200x64xf32, #tpu.memory_space<vmem>>, vector<4x64xf32>
    tpu.vector_store %arg12[%c144, %c0_114], %133 {strides = array<i32>} : memref<200x64xf32, #tpu.memory_space<vmem>>, vector<4x64xf32>,
    %c0_115 = arith.constant 0 : index
    %c0_116 = arith.constant 0 : index
    %135 = vector.load %arg2[%c0_115, %c0_116] : memref<8x200xf32, #tpu.memory_space<vmem>>, vector<8x200xf32>
    %c0_117 = arith.constant 0 : index
    %c0_118 = arith.constant 0 : index
    %136 = vector.load %arg12[%c0_117, %c0_118] : memref<200x64xf32, #tpu.memory_space<vmem>>, vector<200x64xf32>
    %cst_119 = arith.constant dense<0.000000e+00> : vector<8x64xf32>
    %137 = tpu.matmul %135, %136, %cst_119 {dimension_numbers = #tpu.dot_dimension_numbers<[1], [0], [0], [1], [0, 0, 1, 1], [], []>} : vector<8x200xf32>, vector<200x64xf32>, vector<8x64xf32> -> vector<8x64xf32>
    %c0_120 = arith.constant 0 : index
    %c0_121 = arith.constant 0 : index
    %138 = vector.load %arg3[%c0_120, %c0_121] : memref<8x1xf32, #tpu.memory_space<vmem>>, vector<8x1xf32>
    %139 = vector.broadcast %138 : vector<8x1xf32> to vector<8x64xf32>
    %140 = arith.addf %137, %139 : vector<8x64xf32>
    %c0_122 = arith.constant 0 : index
    %c0_123 = arith.constant 0 : index
    %c0_124 = arith.constant 0 : index
    %141 = vector.load %arg4[%c0_122, %c0_123, %c0_124] : memref<4x8x72xf32, #tpu.memory_space<vmem>>, vector<1x8x72xf32>
    %142 = vector.shape_cast %141 : vector<1x8x72xf32> to vector<8x72xf32>
    %c0_125 = arith.constant 0 : index
    %c0_126 = arith.constant 0 : index
    %c0_127 = arith.constant 0 : index
    %143 = vector.load %arg5[%c0_125, %c0_126, %c0_127] : memref<4x8x1xf32, #tpu.memory_space<vmem>>, vector<1x8x1xf32>
    %144 = vector.shape_cast %143 : vector<1x8x1xf32> to vector<8x1xf32>
    %c0_128 = arith.constant 0 : index
    %c9_129 = arith.constant 9 : index
    %145 = vector.load %arg11[%c0_128, %c9_129] : memref<8x82xf32, #tpu.memory_space<vmem>>, vector<8x64xf32>
    tpu.vector_store %arg11[%c0_128, %c9_129], %140 {strides = array<i32>} : memref<8x82xf32, #tpu.memory_space<vmem>>, vector<8x64xf32>,
    %c0_130 = arith.constant 0 : index
    %c0_131 = arith.constant 0 : index
    %146 = vector.load %arg11[%c0_130, %c0_131] : memref<8x82xf32, #tpu.memory_space<vmem>>, vector<8x64xf32>
    %cst_132 = arith.constant 0.000000e+00 : f32
    %147 = vector.shape_cast %4 : vector<1x64xi1> to vector<1x64xi1>
    %148 = vector.broadcast %147 : vector<1x64xi1> to vector<8x64xi1>
    %149 = vector.broadcast %cst_132 : f32 to vector<8x64xf32>
    %150 = arith.select %148, %146, %149 : vector<8x64xi1>, vector<8x64xf32>
    %c0_133 = arith.constant 0 : index
    %c0_134 = arith.constant 0 : index
    %151 = vector.load %arg13[%c0_133, %c0_134] : memref<72x64xf32, #tpu.memory_space<vmem>>, vector<8x64xf32>
    tpu.vector_store %arg13[%c0_133, %c0_134], %150 {strides = array<i32>} : memref<72x64xf32, #tpu.memory_space<vmem>>, vector<8x64xf32>,
    %c0_135 = arith.constant 0 : index
    %c1_136 = arith.constant 1 : index
    %152 = vector.load %arg11[%c0_135, %c1_136] : memref<8x82xf32, #tpu.memory_space<vmem>>, vector<8x64xf32>
    %c8_137 = arith.constant 8 : index
    %c0_138 = arith.constant 0 : index
    %153 = vector.load %arg13[%c8_137, %c0_138] : memref<72x64xf32, #tpu.memory_space<vmem>>, vector<8x64xf32>
    tpu.vector_store %arg13[%c8_137, %c0_138], %152 {strides = array<i32>} : memref<72x64xf32, #tpu.memory_space<vmem>>, vector<8x64xf32>,
    %c0_139 = arith.constant 0 : index
    %c2_140 = arith.constant 2 : index
    %154 = vector.load %arg11[%c0_139, %c2_140] : memref<8x82xf32, #tpu.memory_space<vmem>>, vector<8x64xf32>
    %cst_141 = arith.constant 0.000000e+00 : f32
    %155 = vector.shape_cast %6 : vector<1x64xi1> to vector<1x64xi1>
    %156 = vector.broadcast %155 : vector<1x64xi1> to vector<8x64xi1>
    %157 = vector.broadcast %cst_141 : f32 to vector<8x64xf32>
    %158 = arith.select %156, %154, %157 : vector<8x64xi1>, vector<8x64xf32>
    %c16_142 = arith.constant 16 : index
    %c0_143 = arith.constant 0 : index
    %159 = vector.load %arg13[%c16_142, %c0_143] : memref<72x64xf32, #tpu.memory_space<vmem>>, vector<8x64xf32>
    tpu.vector_store %arg13[%c16_142, %c0_143], %158 {strides = array<i32>} : memref<72x64xf32, #tpu.memory_space<vmem>>, vector<8x64xf32>,
    %c0_144 = arith.constant 0 : index
    %c8_145 = arith.constant 8 : index
    %160 = vector.load %arg11[%c0_144, %c8_145] : memref<8x82xf32, #tpu.memory_space<vmem>>, vector<8x64xf32>
    %cst_146 = arith.constant 0.000000e+00 : f32
    %161 = vector.shape_cast %4 : vector<1x64xi1> to vector<1x64xi1>
    %162 = vector.broadcast %161 : vector<1x64xi1> to vector<8x64xi1>
    %163 = vector.broadcast %cst_146 : f32 to vector<8x64xf32>
    %164 = arith.select %162, %160, %163 : vector<8x64xi1>, vector<8x64xf32>
    %c24_147 = arith.constant 24 : index
    %c0_148 = arith.constant 0 : index
    %165 = vector.load %arg13[%c24_147, %c0_148] : memref<72x64xf32, #tpu.memory_space<vmem>>, vector<8x64xf32>
    tpu.vector_store %arg13[%c24_147, %c0_148], %164 {strides = array<i32>} : memref<72x64xf32, #tpu.memory_space<vmem>>, vector<8x64xf32>,
    %c0_149 = arith.constant 0 : index
    %c9_150 = arith.constant 9 : index
    %166 = vector.load %arg11[%c0_149, %c9_150] : memref<8x82xf32, #tpu.memory_space<vmem>>, vector<8x64xf32>
    %c32_151 = arith.constant 32 : index
    %c0_152 = arith.constant 0 : index
    %167 = vector.load %arg13[%c32_151, %c0_152] : memref<72x64xf32, #tpu.memory_space<vmem>>, vector<8x64xf32>
    tpu.vector_store %arg13[%c32_151, %c0_152], %166 {strides = array<i32>} : memref<72x64xf32, #tpu.memory_space<vmem>>, vector<8x64xf32>,
    %c0_153 = arith.constant 0 : index
    %c10_154 = arith.constant 10 : index
    %168 = vector.load %arg11[%c0_153, %c10_154] : memref<8x82xf32, #tpu.memory_space<vmem>>, vector<8x64xf32>
    %cst_155 = arith.constant 0.000000e+00 : f32
    %169 = vector.shape_cast %6 : vector<1x64xi1> to vector<1x64xi1>
    %170 = vector.broadcast %169 : vector<1x64xi1> to vector<8x64xi1>
    %171 = vector.broadcast %cst_155 : f32 to vector<8x64xf32>
    %172 = arith.select %170, %168, %171 : vector<8x64xi1>, vector<8x64xf32>
    %c40_156 = arith.constant 40 : index
    %c0_157 = arith.constant 0 : index
    %173 = vector.load %arg13[%c40_156, %c0_157] : memref<72x64xf32, #tpu.memory_space<vmem>>, vector<8x64xf32>
    tpu.vector_store %arg13[%c40_156, %c0_157], %172 {strides = array<i32>} : memref<72x64xf32, #tpu.memory_space<vmem>>, vector<8x64xf32>,
    %c0_158 = arith.constant 0 : index
    %c16_159 = arith.constant 16 : index
    %174 = vector.load %arg11[%c0_158, %c16_159] : memref<8x82xf32, #tpu.memory_space<vmem>>, vector<8x64xf32>
    %cst_160 = arith.constant 0.000000e+00 : f32
    %175 = vector.shape_cast %4 : vector<1x64xi1> to vector<1x64xi1>
    %176 = vector.broadcast %175 : vector<1x64xi1> to vector<8x64xi1>
    %177 = vector.broadcast %cst_160 : f32 to vector<8x64xf32>
    %178 = arith.select %176, %174, %177 : vector<8x64xi1>, vector<8x64xf32>
    %c48_161 = arith.constant 48 : index
    %c0_162 = arith.constant 0 : index
    %179 = vector.load %arg13[%c48_161, %c0_162] : memref<72x64xf32, #tpu.memory_space<vmem>>, vector<8x64xf32>
    tpu.vector_store %arg13[%c48_161, %c0_162], %178 {strides = array<i32>} : memref<72x64xf32, #tpu.memory_space<vmem>>, vector<8x64xf32>,
    %c0_163 = arith.constant 0 : index
    %c17_164 = arith.constant 17 : index
    %180 = vector.load %arg11[%c0_163, %c17_164] : memref<8x82xf32, #tpu.memory_space<vmem>>, vector<8x64xf32>
    %c56_165 = arith.constant 56 : index
    %c0_166 = arith.constant 0 : index
    %181 = vector.load %arg13[%c56_165, %c0_166] : memref<72x64xf32, #tpu.memory_space<vmem>>, vector<8x64xf32>
    tpu.vector_store %arg13[%c56_165, %c0_166], %180 {strides = array<i32>} : memref<72x64xf32, #tpu.memory_space<vmem>>, vector<8x64xf32>,
    %c0_167 = arith.constant 0 : index
    %c18_168 = arith.constant 18 : index
    %182 = vector.load %arg11[%c0_167, %c18_168] : memref<8x82xf32, #tpu.memory_space<vmem>>, vector<8x64xf32>
    %cst_169 = arith.constant 0.000000e+00 : f32
    %183 = vector.shape_cast %6 : vector<1x64xi1> to vector<1x64xi1>
    %184 = vector.broadcast %183 : vector<1x64xi1> to vector<8x64xi1>
    %185 = vector.broadcast %cst_169 : f32 to vector<8x64xf32>
    %186 = arith.select %184, %182, %185 : vector<8x64xi1>, vector<8x64xf32>
    %c64_170 = arith.constant 64 : index
    %c0_171 = arith.constant 0 : index
    %187 = vector.load %arg13[%c64_170, %c0_171] : memref<72x64xf32, #tpu.memory_space<vmem>>, vector<8x64xf32>
    tpu.vector_store %arg13[%c64_170, %c0_171], %186 {strides = array<i32>} : memref<72x64xf32, #tpu.memory_space<vmem>>, vector<8x64xf32>,
    %c0_172 = arith.constant 0 : index
    %c0_173 = arith.constant 0 : index
    %188 = vector.load %arg13[%c0_172, %c0_173] : memref<72x64xf32, #tpu.memory_space<vmem>>, vector<72x64xf32>
    %cst_174 = arith.constant dense<0.000000e+00> : vector<8x64xf32>
    %189 = tpu.matmul %142, %188, %cst_174 {dimension_numbers = #tpu.dot_dimension_numbers<[1], [0], [0], [1], [0, 0, 1, 1], [], []>} : vector<8x72xf32>, vector<72x64xf32>, vector<8x64xf32> -> vector<8x64xf32>
    %190 = vector.broadcast %144 : vector<8x1xf32> to vector<8x64xf32>
    %191 = arith.addf %189, %190 : vector<8x64xf32>
    %cst_175 = arith.constant 0.000000e+00 : f32
    %192 = vector.broadcast %cst_175 : f32 to vector<8x64xf32>
    %193 = arith.maximumf %191, %192 : vector<8x64xf32>
    %c1_176 = arith.constant 1 : index
    %c0_177 = arith.constant 0 : index
    %c0_178 = arith.constant 0 : index
    %194 = vector.load %arg4[%c1_176, %c0_177, %c0_178] : memref<4x8x72xf32, #tpu.memory_space<vmem>>, vector<1x8x72xf32>
    %195 = vector.shape_cast %194 : vector<1x8x72xf32> to vector<8x72xf32>
    %c1_179 = arith.constant 1 : index
    %c0_180 = arith.constant 0 : index
    %c0_181 = arith.constant 0 : index
    %196 = vector.load %arg5[%c1_179, %c0_180, %c0_181] : memref<4x8x1xf32, #tpu.memory_space<vmem>>, vector<1x8x1xf32>
    %197 = vector.shape_cast %196 : vector<1x8x1xf32> to vector<8x1xf32>
    %c0_182 = arith.constant 0 : index
    %c9_183 = arith.constant 9 : index
    %198 = vector.load %arg11[%c0_182, %c9_183] : memref<8x82xf32, #tpu.memory_space<vmem>>, vector<8x64xf32>
    tpu.vector_store %arg11[%c0_182, %c9_183], %193 {strides = array<i32>} : memref<8x82xf32, #tpu.memory_space<vmem>>, vector<8x64xf32>,
    %c0_184 = arith.constant 0 : index
    %c0_185 = arith.constant 0 : index
    %199 = vector.load %arg11[%c0_184, %c0_185] : memref<8x82xf32, #tpu.memory_space<vmem>>, vector<8x64xf32>
    %cst_186 = arith.constant 0.000000e+00 : f32
    %200 = vector.shape_cast %4 : vector<1x64xi1> to vector<1x64xi1>
    %201 = vector.broadcast %200 : vector<1x64xi1> to vector<8x64xi1>
    %202 = vector.broadcast %cst_186 : f32 to vector<8x64xf32>
    %203 = arith.select %201, %199, %202 : vector<8x64xi1>, vector<8x64xf32>
    %c0_187 = arith.constant 0 : index
    %c0_188 = arith.constant 0 : index
    %204 = vector.load %arg13[%c0_187, %c0_188] : memref<72x64xf32, #tpu.memory_space<vmem>>, vector<8x64xf32>
    tpu.vector_store %arg13[%c0_187, %c0_188], %203 {strides = array<i32>} : memref<72x64xf32, #tpu.memory_space<vmem>>, vector<8x64xf32>,
    %c0_189 = arith.constant 0 : index
    %c1_190 = arith.constant 1 : index
    %205 = vector.load %arg11[%c0_189, %c1_190] : memref<8x82xf32, #tpu.memory_space<vmem>>, vector<8x64xf32>
    %c8_191 = arith.constant 8 : index
    %c0_192 = arith.constant 0 : index
    %206 = vector.load %arg13[%c8_191, %c0_192] : memref<72x64xf32, #tpu.memory_space<vmem>>, vector<8x64xf32>
    tpu.vector_store %arg13[%c8_191, %c0_192], %205 {strides = array<i32>} : memref<72x64xf32, #tpu.memory_space<vmem>>, vector<8x64xf32>,
    %c0_193 = arith.constant 0 : index
    %c2_194 = arith.constant 2 : index
    %207 = vector.load %arg11[%c0_193, %c2_194] : memref<8x82xf32, #tpu.memory_space<vmem>>, vector<8x64xf32>
    %cst_195 = arith.constant 0.000000e+00 : f32
    %208 = vector.shape_cast %6 : vector<1x64xi1> to vector<1x64xi1>
    %209 = vector.broadcast %208 : vector<1x64xi1> to vector<8x64xi1>
    %210 = vector.broadcast %cst_195 : f32 to vector<8x64xf32>
    %211 = arith.select %209, %207, %210 : vector<8x64xi1>, vector<8x64xf32>
    %c16_196 = arith.constant 16 : index
    %c0_197 = arith.constant 0 : index
    %212 = vector.load %arg13[%c16_196, %c0_197] : memref<72x64xf32, #tpu.memory_space<vmem>>, vector<8x64xf32>
    tpu.vector_store %arg13[%c16_196, %c0_197], %211 {strides = array<i32>} : memref<72x64xf32, #tpu.memory_space<vmem>>, vector<8x64xf32>,
    %c0_198 = arith.constant 0 : index
    %c8_199 = arith.constant 8 : index
    %213 = vector.load %arg11[%c0_198, %c8_199] : memref<8x82xf32, #tpu.memory_space<vmem>>, vector<8x64xf32>
    %cst_200 = arith.constant 0.000000e+00 : f32
    %214 = vector.shape_cast %4 : vector<1x64xi1> to vector<1x64xi1>
    %215 = vector.broadcast %214 : vector<1x64xi1> to vector<8x64xi1>
    %216 = vector.broadcast %cst_200 : f32 to vector<8x64xf32>
    %217 = arith.select %215, %213, %216 : vector<8x64xi1>, vector<8x64xf32>
    %c24_201 = arith.constant 24 : index
    %c0_202 = arith.constant 0 : index
    %218 = vector.load %arg13[%c24_201, %c0_202] : memref<72x64xf32, #tpu.memory_space<vmem>>, vector<8x64xf32>
    tpu.vector_store %arg13[%c24_201, %c0_202], %217 {strides = array<i32>} : memref<72x64xf32, #tpu.memory_space<vmem>>, vector<8x64xf32>,
    %c0_203 = arith.constant 0 : index
    %c9_204 = arith.constant 9 : index
    %219 = vector.load %arg11[%c0_203, %c9_204] : memref<8x82xf32, #tpu.memory_space<vmem>>, vector<8x64xf32>
    %c32_205 = arith.constant 32 : index
    %c0_206 = arith.constant 0 : index
    %220 = vector.load %arg13[%c32_205, %c0_206] : memref<72x64xf32, #tpu.memory_space<vmem>>, vector<8x64xf32>
    tpu.vector_store %arg13[%c32_205, %c0_206], %219 {strides = array<i32>} : memref<72x64xf32, #tpu.memory_space<vmem>>, vector<8x64xf32>,
    %c0_207 = arith.constant 0 : index
    %c10_208 = arith.constant 10 : index
    %221 = vector.load %arg11[%c0_207, %c10_208] : memref<8x82xf32, #tpu.memory_space<vmem>>, vector<8x64xf32>
    %cst_209 = arith.constant 0.000000e+00 : f32
    %222 = vector.shape_cast %6 : vector<1x64xi1> to vector<1x64xi1>
    %223 = vector.broadcast %222 : vector<1x64xi1> to vector<8x64xi1>
    %224 = vector.broadcast %cst_209 : f32 to vector<8x64xf32>
    %225 = arith.select %223, %221, %224 : vector<8x64xi1>, vector<8x64xf32>
    %c40_210 = arith.constant 40 : index
    %c0_211 = arith.constant 0 : index
    %226 = vector.load %arg13[%c40_210, %c0_211] : memref<72x64xf32, #tpu.memory_space<vmem>>, vector<8x64xf32>
    tpu.vector_store %arg13[%c40_210, %c0_211], %225 {strides = array<i32>} : memref<72x64xf32, #tpu.memory_space<vmem>>, vector<8x64xf32>,
    %c0_212 = arith.constant 0 : index
    %c16_213 = arith.constant 16 : index
    %227 = vector.load %arg11[%c0_212, %c16_213] : memref<8x82xf32, #tpu.memory_space<vmem>>, vector<8x64xf32>
    %cst_214 = arith.constant 0.000000e+00 : f32
    %228 = vector.shape_cast %4 : vector<1x64xi1> to vector<1x64xi1>
    %229 = vector.broadcast %228 : vector<1x64xi1> to vector<8x64xi1>
    %230 = vector.broadcast %cst_214 : f32 to vector<8x64xf32>
    %231 = arith.select %229, %227, %230 : vector<8x64xi1>, vector<8x64xf32>
    %c48_215 = arith.constant 48 : index
    %c0_216 = arith.constant 0 : index
    %232 = vector.load %arg13[%c48_215, %c0_216] : memref<72x64xf32, #tpu.memory_space<vmem>>, vector<8x64xf32>
    tpu.vector_store %arg13[%c48_215, %c0_216], %231 {strides = array<i32>} : memref<72x64xf32, #tpu.memory_space<vmem>>, vector<8x64xf32>,
    %c0_217 = arith.constant 0 : index
    %c17_218 = arith.constant 17 : index
    %233 = vector.load %arg11[%c0_217, %c17_218] : memref<8x82xf32, #tpu.memory_space<vmem>>, vector<8x64xf32>
    %c56_219 = arith.constant 56 : index
    %c0_220 = arith.constant 0 : index
    %234 = vector.load %arg13[%c56_219, %c0_220] : memref<72x64xf32, #tpu.memory_space<vmem>>, vector<8x64xf32>
    tpu.vector_store %arg13[%c56_219, %c0_220], %233 {strides = array<i32>} : memref<72x64xf32, #tpu.memory_space<vmem>>, vector<8x64xf32>,
    %c0_221 = arith.constant 0 : index
    %c18_222 = arith.constant 18 : index
    %235 = vector.load %arg11[%c0_221, %c18_222] : memref<8x82xf32, #tpu.memory_space<vmem>>, vector<8x64xf32>
    %cst_223 = arith.constant 0.000000e+00 : f32
    %236 = vector.shape_cast %6 : vector<1x64xi1> to vector<1x64xi1>
    %237 = vector.broadcast %236 : vector<1x64xi1> to vector<8x64xi1>
    %238 = vector.broadcast %cst_223 : f32 to vector<8x64xf32>
    %239 = arith.select %237, %235, %238 : vector<8x64xi1>, vector<8x64xf32>
    %c64_224 = arith.constant 64 : index
    %c0_225 = arith.constant 0 : index
    %240 = vector.load %arg13[%c64_224, %c0_225] : memref<72x64xf32, #tpu.memory_space<vmem>>, vector<8x64xf32>
    tpu.vector_store %arg13[%c64_224, %c0_225], %239 {strides = array<i32>} : memref<72x64xf32, #tpu.memory_space<vmem>>, vector<8x64xf32>,
    %c0_226 = arith.constant 0 : index
    %c0_227 = arith.constant 0 : index
    %241 = vector.load %arg13[%c0_226, %c0_227] : memref<72x64xf32, #tpu.memory_space<vmem>>, vector<72x64xf32>
    %cst_228 = arith.constant dense<0.000000e+00> : vector<8x64xf32>
    %242 = tpu.matmul %195, %241, %cst_228 {dimension_numbers = #tpu.dot_dimension_numbers<[1], [0], [0], [1], [0, 0, 1, 1], [], []>} : vector<8x72xf32>, vector<72x64xf32>, vector<8x64xf32> -> vector<8x64xf32>
    %243 = vector.broadcast %197 : vector<8x1xf32> to vector<8x64xf32>
    %244 = arith.addf %242, %243 : vector<8x64xf32>
    %245 = arith.addf %244, %140 : vector<8x64xf32>
    %c2_229 = arith.constant 2 : index
    %c0_230 = arith.constant 0 : index
    %c0_231 = arith.constant 0 : index
    %246 = vector.load %arg4[%c2_229, %c0_230, %c0_231] : memref<4x8x72xf32, #tpu.memory_space<vmem>>, vector<1x8x72xf32>
    %247 = vector.shape_cast %246 : vector<1x8x72xf32> to vector<8x72xf32>
    %c2_232 = arith.constant 2 : index
    %c0_233 = arith.constant 0 : index
    %c0_234 = arith.constant 0 : index
    %248 = vector.load %arg5[%c2_232, %c0_233, %c0_234] : memref<4x8x1xf32, #tpu.memory_space<vmem>>, vector<1x8x1xf32>
    %249 = vector.shape_cast %248 : vector<1x8x1xf32> to vector<8x1xf32>
    %c0_235 = arith.constant 0 : index
    %c9_236 = arith.constant 9 : index
    %250 = vector.load %arg11[%c0_235, %c9_236] : memref<8x82xf32, #tpu.memory_space<vmem>>, vector<8x64xf32>
    tpu.vector_store %arg11[%c0_235, %c9_236], %245 {strides = array<i32>} : memref<8x82xf32, #tpu.memory_space<vmem>>, vector<8x64xf32>,
    %c0_237 = arith.constant 0 : index
    %c0_238 = arith.constant 0 : index
    %251 = vector.load %arg11[%c0_237, %c0_238] : memref<8x82xf32, #tpu.memory_space<vmem>>, vector<8x64xf32>
    %cst_239 = arith.constant 0.000000e+00 : f32
    %252 = vector.shape_cast %4 : vector<1x64xi1> to vector<1x64xi1>
    %253 = vector.broadcast %252 : vector<1x64xi1> to vector<8x64xi1>
    %254 = vector.broadcast %cst_239 : f32 to vector<8x64xf32>
    %255 = arith.select %253, %251, %254 : vector<8x64xi1>, vector<8x64xf32>
    %c0_240 = arith.constant 0 : index
    %c0_241 = arith.constant 0 : index
    %256 = vector.load %arg13[%c0_240, %c0_241] : memref<72x64xf32, #tpu.memory_space<vmem>>, vector<8x64xf32>
    tpu.vector_store %arg13[%c0_240, %c0_241], %255 {strides = array<i32>} : memref<72x64xf32, #tpu.memory_space<vmem>>, vector<8x64xf32>,
    %c0_242 = arith.constant 0 : index
    %c1_243 = arith.constant 1 : index
    %257 = vector.load %arg11[%c0_242, %c1_243] : memref<8x82xf32, #tpu.memory_space<vmem>>, vector<8x64xf32>
    %c8_244 = arith.constant 8 : index
    %c0_245 = arith.constant 0 : index
    %258 = vector.load %arg13[%c8_244, %c0_245] : memref<72x64xf32, #tpu.memory_space<vmem>>, vector<8x64xf32>
    tpu.vector_store %arg13[%c8_244, %c0_245], %257 {strides = array<i32>} : memref<72x64xf32, #tpu.memory_space<vmem>>, vector<8x64xf32>,
    %c0_246 = arith.constant 0 : index
    %c2_247 = arith.constant 2 : index
    %259 = vector.load %arg11[%c0_246, %c2_247] : memref<8x82xf32, #tpu.memory_space<vmem>>, vector<8x64xf32>
    %cst_248 = arith.constant 0.000000e+00 : f32
    %260 = vector.shape_cast %6 : vector<1x64xi1> to vector<1x64xi1>
    %261 = vector.broadcast %260 : vector<1x64xi1> to vector<8x64xi1>
    %262 = vector.broadcast %cst_248 : f32 to vector<8x64xf32>
    %263 = arith.select %261, %259, %262 : vector<8x64xi1>, vector<8x64xf32>
    %c16_249 = arith.constant 16 : index
    %c0_250 = arith.constant 0 : index
    %264 = vector.load %arg13[%c16_249, %c0_250] : memref<72x64xf32, #tpu.memory_space<vmem>>, vector<8x64xf32>
    tpu.vector_store %arg13[%c16_249, %c0_250], %263 {strides = array<i32>} : memref<72x64xf32, #tpu.memory_space<vmem>>, vector<8x64xf32>,
    %c0_251 = arith.constant 0 : index
    %c8_252 = arith.constant 8 : index
    %265 = vector.load %arg11[%c0_251, %c8_252] : memref<8x82xf32, #tpu.memory_space<vmem>>, vector<8x64xf32>
    %cst_253 = arith.constant 0.000000e+00 : f32
    %266 = vector.shape_cast %4 : vector<1x64xi1> to vector<1x64xi1>
    %267 = vector.broadcast %266 : vector<1x64xi1> to vector<8x64xi1>
    %268 = vector.broadcast %cst_253 : f32 to vector<8x64xf32>
    %269 = arith.select %267, %265, %268 : vector<8x64xi1>, vector<8x64xf32>
    %c24_254 = arith.constant 24 : index
    %c0_255 = arith.constant 0 : index
    %270 = vector.load %arg13[%c24_254, %c0_255] : memref<72x64xf32, #tpu.memory_space<vmem>>, vector<8x64xf32>
    tpu.vector_store %arg13[%c24_254, %c0_255], %269 {strides = array<i32>} : memref<72x64xf32, #tpu.memory_space<vmem>>, vector<8x64xf32>,
    %c0_256 = arith.constant 0 : index
    %c9_257 = arith.constant 9 : index
    %271 = vector.load %arg11[%c0_256, %c9_257] : memref<8x82xf32, #tpu.memory_space<vmem>>, vector<8x64xf32>
    %c32_258 = arith.constant 32 : index
    %c0_259 = arith.constant 0 : index
    %272 = vector.load %arg13[%c32_258, %c0_259] : memref<72x64xf32, #tpu.memory_space<vmem>>, vector<8x64xf32>
    tpu.vector_store %arg13[%c32_258, %c0_259], %271 {strides = array<i32>} : memref<72x64xf32, #tpu.memory_space<vmem>>, vector<8x64xf32>,
    %c0_260 = arith.constant 0 : index
    %c10_261 = arith.constant 10 : index
    %273 = vector.load %arg11[%c0_260, %c10_261] : memref<8x82xf32, #tpu.memory_space<vmem>>, vector<8x64xf32>
    %cst_262 = arith.constant 0.000000e+00 : f32
    %274 = vector.shape_cast %6 : vector<1x64xi1> to vector<1x64xi1>
    %275 = vector.broadcast %274 : vector<1x64xi1> to vector<8x64xi1>
    %276 = vector.broadcast %cst_262 : f32 to vector<8x64xf32>
    %277 = arith.select %275, %273, %276 : vector<8x64xi1>, vector<8x64xf32>
    %c40_263 = arith.constant 40 : index
    %c0_264 = arith.constant 0 : index
    %278 = vector.load %arg13[%c40_263, %c0_264] : memref<72x64xf32, #tpu.memory_space<vmem>>, vector<8x64xf32>
    tpu.vector_store %arg13[%c40_263, %c0_264], %277 {strides = array<i32>} : memref<72x64xf32, #tpu.memory_space<vmem>>, vector<8x64xf32>,
    %c0_265 = arith.constant 0 : index
    %c16_266 = arith.constant 16 : index
    %279 = vector.load %arg11[%c0_265, %c16_266] : memref<8x82xf32, #tpu.memory_space<vmem>>, vector<8x64xf32>
    %cst_267 = arith.constant 0.000000e+00 : f32
    %280 = vector.shape_cast %4 : vector<1x64xi1> to vector<1x64xi1>
    %281 = vector.broadcast %280 : vector<1x64xi1> to vector<8x64xi1>
    %282 = vector.broadcast %cst_267 : f32 to vector<8x64xf32>
    %283 = arith.select %281, %279, %282 : vector<8x64xi1>, vector<8x64xf32>
    %c48_268 = arith.constant 48 : index
    %c0_269 = arith.constant 0 : index
    %284 = vector.load %arg13[%c48_268, %c0_269] : memref<72x64xf32, #tpu.memory_space<vmem>>, vector<8x64xf32>
    tpu.vector_store %arg13[%c48_268, %c0_269], %283 {strides = array<i32>} : memref<72x64xf32, #tpu.memory_space<vmem>>, vector<8x64xf32>,
    %c0_270 = arith.constant 0 : index
    %c17_271 = arith.constant 17 : index
    %285 = vector.load %arg11[%c0_270, %c17_271] : memref<8x82xf32, #tpu.memory_space<vmem>>, vector<8x64xf32>
    %c56_272 = arith.constant 56 : index
    %c0_273 = arith.constant 0 : index
    %286 = vector.load %arg13[%c56_272, %c0_273] : memref<72x64xf32, #tpu.memory_space<vmem>>, vector<8x64xf32>
    tpu.vector_store %arg13[%c56_272, %c0_273], %285 {strides = array<i32>} : memref<72x64xf32, #tpu.memory_space<vmem>>, vector<8x64xf32>,
    %c0_274 = arith.constant 0 : index
    %c18_275 = arith.constant 18 : index
    %287 = vector.load %arg11[%c0_274, %c18_275] : memref<8x82xf32, #tpu.memory_space<vmem>>, vector<8x64xf32>
    %cst_276 = arith.constant 0.000000e+00 : f32
    %288 = vector.shape_cast %6 : vector<1x64xi1> to vector<1x64xi1>
    %289 = vector.broadcast %288 : vector<1x64xi1> to vector<8x64xi1>
    %290 = vector.broadcast %cst_276 : f32 to vector<8x64xf32>
    %291 = arith.select %289, %287, %290 : vector<8x64xi1>, vector<8x64xf32>
    %c64_277 = arith.constant 64 : index
    %c0_278 = arith.constant 0 : index
    %292 = vector.load %arg13[%c64_277, %c0_278] : memref<72x64xf32, #tpu.memory_space<vmem>>, vector<8x64xf32>
    tpu.vector_store %arg13[%c64_277, %c0_278], %291 {strides = array<i32>} : memref<72x64xf32, #tpu.memory_space<vmem>>, vector<8x64xf32>,
    %c0_279 = arith.constant 0 : index
    %c0_280 = arith.constant 0 : index
    %293 = vector.load %arg13[%c0_279, %c0_280] : memref<72x64xf32, #tpu.memory_space<vmem>>, vector<72x64xf32>
    %cst_281 = arith.constant dense<0.000000e+00> : vector<8x64xf32>
    %294 = tpu.matmul %247, %293, %cst_281 {dimension_numbers = #tpu.dot_dimension_numbers<[1], [0], [0], [1], [0, 0, 1, 1], [], []>} : vector<8x72xf32>, vector<72x64xf32>, vector<8x64xf32> -> vector<8x64xf32>
    %295 = vector.broadcast %249 : vector<8x1xf32> to vector<8x64xf32>
    %296 = arith.addf %294, %295 : vector<8x64xf32>
    %cst_282 = arith.constant 0.000000e+00 : f32
    %297 = vector.broadcast %cst_282 : f32 to vector<8x64xf32>
    %298 = arith.maximumf %296, %297 : vector<8x64xf32>
    %c3_283 = arith.constant 3 : index
    %c0_284 = arith.constant 0 : index
    %c0_285 = arith.constant 0 : index
    %299 = vector.load %arg4[%c3_283, %c0_284, %c0_285] : memref<4x8x72xf32, #tpu.memory_space<vmem>>, vector<1x8x72xf32>
    %300 = vector.shape_cast %299 : vector<1x8x72xf32> to vector<8x72xf32>
    %c3_286 = arith.constant 3 : index
    %c0_287 = arith.constant 0 : index
    %c0_288 = arith.constant 0 : index
    %301 = vector.load %arg5[%c3_286, %c0_287, %c0_288] : memref<4x8x1xf32, #tpu.memory_space<vmem>>, vector<1x8x1xf32>
    %302 = vector.shape_cast %301 : vector<1x8x1xf32> to vector<8x1xf32>
    %c0_289 = arith.constant 0 : index
    %c9_290 = arith.constant 9 : index
    %303 = vector.load %arg11[%c0_289, %c9_290] : memref<8x82xf32, #tpu.memory_space<vmem>>, vector<8x64xf32>
    tpu.vector_store %arg11[%c0_289, %c9_290], %298 {strides = array<i32>} : memref<8x82xf32, #tpu.memory_space<vmem>>, vector<8x64xf32>,
    %c0_291 = arith.constant 0 : index
    %c0_292 = arith.constant 0 : index
    %304 = vector.load %arg11[%c0_291, %c0_292] : memref<8x82xf32, #tpu.memory_space<vmem>>, vector<8x64xf32>
    %cst_293 = arith.constant 0.000000e+00 : f32
    %305 = vector.shape_cast %4 : vector<1x64xi1> to vector<1x64xi1>
    %306 = vector.broadcast %305 : vector<1x64xi1> to vector<8x64xi1>
    %307 = vector.broadcast %cst_293 : f32 to vector<8x64xf32>
    %308 = arith.select %306, %304, %307 : vector<8x64xi1>, vector<8x64xf32>
    %c0_294 = arith.constant 0 : index
    %c0_295 = arith.constant 0 : index
    %309 = vector.load %arg13[%c0_294, %c0_295] : memref<72x64xf32, #tpu.memory_space<vmem>>, vector<8x64xf32>
    tpu.vector_store %arg13[%c0_294, %c0_295], %308 {strides = array<i32>} : memref<72x64xf32, #tpu.memory_space<vmem>>, vector<8x64xf32>,
    %c0_296 = arith.constant 0 : index
    %c1_297 = arith.constant 1 : index
    %310 = vector.load %arg11[%c0_296, %c1_297] : memref<8x82xf32, #tpu.memory_space<vmem>>, vector<8x64xf32>
    %c8_298 = arith.constant 8 : index
    %c0_299 = arith.constant 0 : index
    %311 = vector.load %arg13[%c8_298, %c0_299] : memref<72x64xf32, #tpu.memory_space<vmem>>, vector<8x64xf32>
    tpu.vector_store %arg13[%c8_298, %c0_299], %310 {strides = array<i32>} : memref<72x64xf32, #tpu.memory_space<vmem>>, vector<8x64xf32>,
    %c0_300 = arith.constant 0 : index
    %c2_301 = arith.constant 2 : index
    %312 = vector.load %arg11[%c0_300, %c2_301] : memref<8x82xf32, #tpu.memory_space<vmem>>, vector<8x64xf32>
    %cst_302 = arith.constant 0.000000e+00 : f32
    %313 = vector.shape_cast %6 : vector<1x64xi1> to vector<1x64xi1>
    %314 = vector.broadcast %313 : vector<1x64xi1> to vector<8x64xi1>
    %315 = vector.broadcast %cst_302 : f32 to vector<8x64xf32>
    %316 = arith.select %314, %312, %315 : vector<8x64xi1>, vector<8x64xf32>
    %c16_303 = arith.constant 16 : index
    %c0_304 = arith.constant 0 : index
    %317 = vector.load %arg13[%c16_303, %c0_304] : memref<72x64xf32, #tpu.memory_space<vmem>>, vector<8x64xf32>
    tpu.vector_store %arg13[%c16_303, %c0_304], %316 {strides = array<i32>} : memref<72x64xf32, #tpu.memory_space<vmem>>, vector<8x64xf32>,
    %c0_305 = arith.constant 0 : index
    %c8_306 = arith.constant 8 : index
    %318 = vector.load %arg11[%c0_305, %c8_306] : memref<8x82xf32, #tpu.memory_space<vmem>>, vector<8x64xf32>
    %cst_307 = arith.constant 0.000000e+00 : f32
    %319 = vector.shape_cast %4 : vector<1x64xi1> to vector<1x64xi1>
    %320 = vector.broadcast %319 : vector<1x64xi1> to vector<8x64xi1>
    %321 = vector.broadcast %cst_307 : f32 to vector<8x64xf32>
    %322 = arith.select %320, %318, %321 : vector<8x64xi1>, vector<8x64xf32>
    %c24_308 = arith.constant 24 : index
    %c0_309 = arith.constant 0 : index
    %323 = vector.load %arg13[%c24_308, %c0_309] : memref<72x64xf32, #tpu.memory_space<vmem>>, vector<8x64xf32>
    tpu.vector_store %arg13[%c24_308, %c0_309], %322 {strides = array<i32>} : memref<72x64xf32, #tpu.memory_space<vmem>>, vector<8x64xf32>,
    %c0_310 = arith.constant 0 : index
    %c9_311 = arith.constant 9 : index
    %324 = vector.load %arg11[%c0_310, %c9_311] : memref<8x82xf32, #tpu.memory_space<vmem>>, vector<8x64xf32>
    %c32_312 = arith.constant 32 : index
    %c0_313 = arith.constant 0 : index
    %325 = vector.load %arg13[%c32_312, %c0_313] : memref<72x64xf32, #tpu.memory_space<vmem>>, vector<8x64xf32>
    tpu.vector_store %arg13[%c32_312, %c0_313], %324 {strides = array<i32>} : memref<72x64xf32, #tpu.memory_space<vmem>>, vector<8x64xf32>,
    %c0_314 = arith.constant 0 : index
    %c10_315 = arith.constant 10 : index
    %326 = vector.load %arg11[%c0_314, %c10_315] : memref<8x82xf32, #tpu.memory_space<vmem>>, vector<8x64xf32>
    %cst_316 = arith.constant 0.000000e+00 : f32
    %327 = vector.shape_cast %6 : vector<1x64xi1> to vector<1x64xi1>
    %328 = vector.broadcast %327 : vector<1x64xi1> to vector<8x64xi1>
    %329 = vector.broadcast %cst_316 : f32 to vector<8x64xf32>
    %330 = arith.select %328, %326, %329 : vector<8x64xi1>, vector<8x64xf32>
    %c40_317 = arith.constant 40 : index
    %c0_318 = arith.constant 0 : index
    %331 = vector.load %arg13[%c40_317, %c0_318] : memref<72x64xf32, #tpu.memory_space<vmem>>, vector<8x64xf32>
    tpu.vector_store %arg13[%c40_317, %c0_318], %330 {strides = array<i32>} : memref<72x64xf32, #tpu.memory_space<vmem>>, vector<8x64xf32>,
    %c0_319 = arith.constant 0 : index
    %c16_320 = arith.constant 16 : index
    %332 = vector.load %arg11[%c0_319, %c16_320] : memref<8x82xf32, #tpu.memory_space<vmem>>, vector<8x64xf32>
    %cst_321 = arith.constant 0.000000e+00 : f32
    %333 = vector.shape_cast %4 : vector<1x64xi1> to vector<1x64xi1>
    %334 = vector.broadcast %333 : vector<1x64xi1> to vector<8x64xi1>
    %335 = vector.broadcast %cst_321 : f32 to vector<8x64xf32>
    %336 = arith.select %334, %332, %335 : vector<8x64xi1>, vector<8x64xf32>
    %c48_322 = arith.constant 48 : index
    %c0_323 = arith.constant 0 : index
    %337 = vector.load %arg13[%c48_322, %c0_323] : memref<72x64xf32, #tpu.memory_space<vmem>>, vector<8x64xf32>
    tpu.vector_store %arg13[%c48_322, %c0_323], %336 {strides = array<i32>} : memref<72x64xf32, #tpu.memory_space<vmem>>, vector<8x64xf32>,
    %c0_324 = arith.constant 0 : index
    %c17_325 = arith.constant 17 : index
    %338 = vector.load %arg11[%c0_324, %c17_325] : memref<8x82xf32, #tpu.memory_space<vmem>>, vector<8x64xf32>
    %c56_326 = arith.constant 56 : index
    %c0_327 = arith.constant 0 : index
    %339 = vector.load %arg13[%c56_326, %c0_327] : memref<72x64xf32, #tpu.memory_space<vmem>>, vector<8x64xf32>
    tpu.vector_store %arg13[%c56_326, %c0_327], %338 {strides = array<i32>} : memref<72x64xf32, #tpu.memory_space<vmem>>, vector<8x64xf32>,
    %c0_328 = arith.constant 0 : index
    %c18_329 = arith.constant 18 : index
    %340 = vector.load %arg11[%c0_328, %c18_329] : memref<8x82xf32, #tpu.memory_space<vmem>>, vector<8x64xf32>
    %cst_330 = arith.constant 0.000000e+00 : f32
    %341 = vector.shape_cast %6 : vector<1x64xi1> to vector<1x64xi1>
    %342 = vector.broadcast %341 : vector<1x64xi1> to vector<8x64xi1>
    %343 = vector.broadcast %cst_330 : f32 to vector<8x64xf32>
    %344 = arith.select %342, %340, %343 : vector<8x64xi1>, vector<8x64xf32>
    %c64_331 = arith.constant 64 : index
    %c0_332 = arith.constant 0 : index
    %345 = vector.load %arg13[%c64_331, %c0_332] : memref<72x64xf32, #tpu.memory_space<vmem>>, vector<8x64xf32>
    tpu.vector_store %arg13[%c64_331, %c0_332], %344 {strides = array<i32>} : memref<72x64xf32, #tpu.memory_space<vmem>>, vector<8x64xf32>,
    %c0_333 = arith.constant 0 : index
    %c0_334 = arith.constant 0 : index
    %346 = vector.load %arg13[%c0_333, %c0_334] : memref<72x64xf32, #tpu.memory_space<vmem>>, vector<72x64xf32>
    %cst_335 = arith.constant dense<0.000000e+00> : vector<8x64xf32>
    %347 = tpu.matmul %300, %346, %cst_335 {dimension_numbers = #tpu.dot_dimension_numbers<[1], [0], [0], [1], [0, 0, 1, 1], [], []>} : vector<8x72xf32>, vector<72x64xf32>, vector<8x64xf32> -> vector<8x64xf32>
    %348 = vector.broadcast %302 : vector<8x1xf32> to vector<8x64xf32>
    %349 = arith.addf %347, %348 : vector<8x64xf32>
    %350 = arith.addf %349, %245 : vector<8x64xf32>
    %c0_336 = arith.constant 0 : index
    %c0_337 = arith.constant 0 : index
    %351 = vector.load %arg6[%c0_336, %c0_337] : memref<8x72xf32, #tpu.memory_space<vmem>>, vector<8x72xf32>
    %c0_338 = arith.constant 0 : index
    %c0_339 = arith.constant 0 : index
    %352 = vector.load %arg7[%c0_338, %c0_339] : memref<8x1xf32, #tpu.memory_space<vmem>>, vector<8x1xf32>
    %c0_340 = arith.constant 0 : index
    %c9_341 = arith.constant 9 : index
    %353 = vector.load %arg11[%c0_340, %c9_341] : memref<8x82xf32, #tpu.memory_space<vmem>>, vector<8x64xf32>
    tpu.vector_store %arg11[%c0_340, %c9_341], %350 {strides = array<i32>} : memref<8x82xf32, #tpu.memory_space<vmem>>, vector<8x64xf32>,
    %c0_342 = arith.constant 0 : index
    %c0_343 = arith.constant 0 : index
    %354 = vector.load %arg11[%c0_342, %c0_343] : memref<8x82xf32, #tpu.memory_space<vmem>>, vector<8x64xf32>
    %cst_344 = arith.constant 0.000000e+00 : f32
    %355 = vector.shape_cast %4 : vector<1x64xi1> to vector<1x64xi1>
    %356 = vector.broadcast %355 : vector<1x64xi1> to vector<8x64xi1>
    %357 = vector.broadcast %cst_344 : f32 to vector<8x64xf32>
    %358 = arith.select %356, %354, %357 : vector<8x64xi1>, vector<8x64xf32>
    %c0_345 = arith.constant 0 : index
    %c0_346 = arith.constant 0 : index
    %359 = vector.load %arg13[%c0_345, %c0_346] : memref<72x64xf32, #tpu.memory_space<vmem>>, vector<8x64xf32>
    tpu.vector_store %arg13[%c0_345, %c0_346], %358 {strides = array<i32>} : memref<72x64xf32, #tpu.memory_space<vmem>>, vector<8x64xf32>,
    %c0_347 = arith.constant 0 : index
    %c1_348 = arith.constant 1 : index
    %360 = vector.load %arg11[%c0_347, %c1_348] : memref<8x82xf32, #tpu.memory_space<vmem>>, vector<8x64xf32>
    %c8_349 = arith.constant 8 : index
    %c0_350 = arith.constant 0 : index
    %361 = vector.load %arg13[%c8_349, %c0_350] : memref<72x64xf32, #tpu.memory_space<vmem>>, vector<8x64xf32>
    tpu.vector_store %arg13[%c8_349, %c0_350], %360 {strides = array<i32>} : memref<72x64xf32, #tpu.memory_space<vmem>>, vector<8x64xf32>,
    %c0_351 = arith.constant 0 : index
    %c2_352 = arith.constant 2 : index
    %362 = vector.load %arg11[%c0_351, %c2_352] : memref<8x82xf32, #tpu.memory_space<vmem>>, vector<8x64xf32>
    %cst_353 = arith.constant 0.000000e+00 : f32
    %363 = vector.shape_cast %6 : vector<1x64xi1> to vector<1x64xi1>
    %364 = vector.broadcast %363 : vector<1x64xi1> to vector<8x64xi1>
    %365 = vector.broadcast %cst_353 : f32 to vector<8x64xf32>
    %366 = arith.select %364, %362, %365 : vector<8x64xi1>, vector<8x64xf32>
    %c16_354 = arith.constant 16 : index
    %c0_355 = arith.constant 0 : index
    %367 = vector.load %arg13[%c16_354, %c0_355] : memref<72x64xf32, #tpu.memory_space<vmem>>, vector<8x64xf32>
    tpu.vector_store %arg13[%c16_354, %c0_355], %366 {strides = array<i32>} : memref<72x64xf32, #tpu.memory_space<vmem>>, vector<8x64xf32>,
    %c0_356 = arith.constant 0 : index
    %c8_357 = arith.constant 8 : index
    %368 = vector.load %arg11[%c0_356, %c8_357] : memref<8x82xf32, #tpu.memory_space<vmem>>, vector<8x64xf32>
    %cst_358 = arith.constant 0.000000e+00 : f32
    %369 = vector.shape_cast %4 : vector<1x64xi1> to vector<1x64xi1>
    %370 = vector.broadcast %369 : vector<1x64xi1> to vector<8x64xi1>
    %371 = vector.broadcast %cst_358 : f32 to vector<8x64xf32>
    %372 = arith.select %370, %368, %371 : vector<8x64xi1>, vector<8x64xf32>
    %c24_359 = arith.constant 24 : index
    %c0_360 = arith.constant 0 : index
    %373 = vector.load %arg13[%c24_359, %c0_360] : memref<72x64xf32, #tpu.memory_space<vmem>>, vector<8x64xf32>
    tpu.vector_store %arg13[%c24_359, %c0_360], %372 {strides = array<i32>} : memref<72x64xf32, #tpu.memory_space<vmem>>, vector<8x64xf32>,
    %c0_361 = arith.constant 0 : index
    %c9_362 = arith.constant 9 : index
    %374 = vector.load %arg11[%c0_361, %c9_362] : memref<8x82xf32, #tpu.memory_space<vmem>>, vector<8x64xf32>
    %c32_363 = arith.constant 32 : index
    %c0_364 = arith.constant 0 : index
    %375 = vector.load %arg13[%c32_363, %c0_364] : memref<72x64xf32, #tpu.memory_space<vmem>>, vector<8x64xf32>
    tpu.vector_store %arg13[%c32_363, %c0_364], %374 {strides = array<i32>} : memref<72x64xf32, #tpu.memory_space<vmem>>, vector<8x64xf32>,
    %c0_365 = arith.constant 0 : index
    %c10_366 = arith.constant 10 : index
    %376 = vector.load %arg11[%c0_365, %c10_366] : memref<8x82xf32, #tpu.memory_space<vmem>>, vector<8x64xf32>
    %cst_367 = arith.constant 0.000000e+00 : f32
    %377 = vector.shape_cast %6 : vector<1x64xi1> to vector<1x64xi1>
    %378 = vector.broadcast %377 : vector<1x64xi1> to vector<8x64xi1>
    %379 = vector.broadcast %cst_367 : f32 to vector<8x64xf32>
    %380 = arith.select %378, %376, %379 : vector<8x64xi1>, vector<8x64xf32>
    %c40_368 = arith.constant 40 : index
    %c0_369 = arith.constant 0 : index
    %381 = vector.load %arg13[%c40_368, %c0_369] : memref<72x64xf32, #tpu.memory_space<vmem>>, vector<8x64xf32>
    tpu.vector_store %arg13[%c40_368, %c0_369], %380 {strides = array<i32>} : memref<72x64xf32, #tpu.memory_space<vmem>>, vector<8x64xf32>,
    %c0_370 = arith.constant 0 : index
    %c16_371 = arith.constant 16 : index
    %382 = vector.load %arg11[%c0_370, %c16_371] : memref<8x82xf32, #tpu.memory_space<vmem>>, vector<8x64xf32>
    %cst_372 = arith.constant 0.000000e+00 : f32
    %383 = vector.shape_cast %4 : vector<1x64xi1> to vector<1x64xi1>
    %384 = vector.broadcast %383 : vector<1x64xi1> to vector<8x64xi1>
    %385 = vector.broadcast %cst_372 : f32 to vector<8x64xf32>
    %386 = arith.select %384, %382, %385 : vector<8x64xi1>, vector<8x64xf32>
    %c48_373 = arith.constant 48 : index
    %c0_374 = arith.constant 0 : index
    %387 = vector.load %arg13[%c48_373, %c0_374] : memref<72x64xf32, #tpu.memory_space<vmem>>, vector<8x64xf32>
    tpu.vector_store %arg13[%c48_373, %c0_374], %386 {strides = array<i32>} : memref<72x64xf32, #tpu.memory_space<vmem>>, vector<8x64xf32>,
    %c0_375 = arith.constant 0 : index
    %c17_376 = arith.constant 17 : index
    %388 = vector.load %arg11[%c0_375, %c17_376] : memref<8x82xf32, #tpu.memory_space<vmem>>, vector<8x64xf32>
    %c56_377 = arith.constant 56 : index
    %c0_378 = arith.constant 0 : index
    %389 = vector.load %arg13[%c56_377, %c0_378] : memref<72x64xf32, #tpu.memory_space<vmem>>, vector<8x64xf32>
    tpu.vector_store %arg13[%c56_377, %c0_378], %388 {strides = array<i32>} : memref<72x64xf32, #tpu.memory_space<vmem>>, vector<8x64xf32>,
    %c0_379 = arith.constant 0 : index
    %c18_380 = arith.constant 18 : index
    %390 = vector.load %arg11[%c0_379, %c18_380] : memref<8x82xf32, #tpu.memory_space<vmem>>, vector<8x64xf32>
    %cst_381 = arith.constant 0.000000e+00 : f32
    %391 = vector.shape_cast %6 : vector<1x64xi1> to vector<1x64xi1>
    %392 = vector.broadcast %391 : vector<1x64xi1> to vector<8x64xi1>
    %393 = vector.broadcast %cst_381 : f32 to vector<8x64xf32>
    %394 = arith.select %392, %390, %393 : vector<8x64xi1>, vector<8x64xf32>
    %c64_382 = arith.constant 64 : index
    %c0_383 = arith.constant 0 : index
    %395 = vector.load %arg13[%c64_382, %c0_383] : memref<72x64xf32, #tpu.memory_space<vmem>>, vector<8x64xf32>
    tpu.vector_store %arg13[%c64_382, %c0_383], %394 {strides = array<i32>} : memref<72x64xf32, #tpu.memory_space<vmem>>, vector<8x64xf32>,
    %c0_384 = arith.constant 0 : index
    %c0_385 = arith.constant 0 : index
    %396 = vector.load %arg13[%c0_384, %c0_385] : memref<72x64xf32, #tpu.memory_space<vmem>>, vector<72x64xf32>
    %cst_386 = arith.constant dense<0.000000e+00> : vector<8x64xf32>
    %397 = tpu.matmul %351, %396, %cst_386 {dimension_numbers = #tpu.dot_dimension_numbers<[1], [0], [0], [1], [0, 0, 1, 1], [], []>} : vector<8x72xf32>, vector<72x64xf32>, vector<8x64xf32> -> vector<8x64xf32>
    %398 = vector.broadcast %352 : vector<8x1xf32> to vector<8x64xf32>
    %399 = arith.addf %397, %398 : vector<8x64xf32>
    %400 = arith.addf %399, %140 : vector<8x64xf32>
    %c0_387 = arith.constant 0 : index
    %c0_388 = arith.constant 0 : index
    %401 = vector.load %arg8[%c0_387, %c0_388] : memref<4x8xf32, #tpu.memory_space<vmem>>, vector<4x8xf32>
    %cst_389 = arith.constant dense<0.000000e+00> : vector<4x64xf32>
    %402 = tpu.matmul %401, %400, %cst_389 {dimension_numbers = #tpu.dot_dimension_numbers<[1], [0], [0], [1], [0, 0, 1, 1], [], []>} : vector<4x8xf32>, vector<8x64xf32>, vector<4x64xf32> -> vector<4x64xf32>
    %c0_390 = arith.constant 0 : index
    %c0_391 = arith.constant 0 : index
    %403 = vector.load %arg9[%c0_390, %c0_391] : memref<4x1xf32, #tpu.memory_space<vmem>>, vector<4x1xf32>
    %404 = vector.broadcast %403 : vector<4x1xf32> to vector<4x64xf32>
    %405 = arith.addf %402, %404 : vector<4x64xf32>
    %c0_392 = arith.constant 0 : index
    %c0_393 = arith.constant 0 : index
    %c0_394 = arith.constant 0 : index
    %406 = vector.load %arg10[%c0_392, %c0_393, %c0_394] : memref<1x4x64xf32, #tpu.memory_space<vmem>>, vector<1x4x64xf32>
    %407 = vector.shape_cast %406 : vector<1x4x64xf32> to vector<4x64xf32>
    %408 = vector.shape_cast %405 : vector<4x64xf32> to vector<1x4x64xf32>
    tpu.vector_store %arg10[%c0_392, %c0_393, %c0_394], %408 {strides = array<i32>} : memref<1x4x64xf32, #tpu.memory_space<vmem>>, vector<1x4x64xf32>,
    return
  }
  func.func @transform_0(%arg0: i32) -> (i32, i32, i32, i32) {
    %c0_i32 = arith.constant 0 : i32
    %c0_i32_0 = arith.constant 0 : i32
    %c0_i32_1 = arith.constant 0 : i32
    %c0_i32_2 = arith.constant 0 : i32
    return %arg0, %c0_i32, %c0_i32_0, %c0_i32_1 : i32, i32, i32, i32
  }
  func.func @transform_1(%arg0: i32) -> (i32, i32) {
    %c0_i32 = arith.constant 0 : i32
    %c0_i32_0 = arith.constant 0 : i32
    %c0_i32_1 = arith.constant 0 : i32
    return %c0_i32, %c0_i32_0 : i32, i32
  }
  func.func @transform_2(%arg0: i32) -> (i32, i32) {
    %c0_i32 = arith.constant 0 : i32
    %c0_i32_0 = arith.constant 0 : i32
    %c0_i32_1 = arith.constant 0 : i32
    return %c0_i32, %c0_i32_0 : i32, i32
  }
  func.func @transform_3(%arg0: i32) -> (i32, i32, i32) {
    %c0_i32 = arith.constant 0 : i32
    %c0_i32_0 = arith.constant 0 : i32
    %c0_i32_1 = arith.constant 0 : i32
    %c0_i32_2 = arith.constant 0 : i32
    return %c0_i32, %c0_i32_0, %c0_i32_1 : i32, i32, i32
  }
  func.func @transform_4(%arg0: i32) -> (i32, i32, i32) {
    %c0_i32 = arith.constant 0 : i32
    %c0_i32_0 = arith.constant 0 : i32
    %c0_i32_1 = arith.constant 0 : i32
    %c0_i32_2 = arith.constant 0 : i32
    return %c0_i32, %c0_i32_0, %c0_i32_1 : i32, i32, i32
  }
  func.func @transform_5(%arg0: i32) -> (i32, i32) {
    %c0_i32 = arith.constant 0 : i32
    %c0_i32_0 = arith.constant 0 : i32
    %c0_i32_1 = arith.constant 0 : i32
    return %c0_i32, %c0_i32_0 : i32, i32
  }
  func.func @transform_6(%arg0: i32) -> (i32, i32) {
    %c0_i32 = arith.constant 0 : i32
    %c0_i32_0 = arith.constant 0 : i32
    %c0_i32_1 = arith.constant 0 : i32
    return %c0_i32, %c0_i32_0 : i32, i32
  }
  func.func @transform_7(%arg0: i32) -> (i32, i32) {
    %c0_i32 = arith.constant 0 : i32
    %c0_i32_0 = arith.constant 0 : i32
    %c0_i32_1 = arith.constant 0 : i32
    return %c0_i32, %c0_i32_0 : i32, i32
  }
  func.func @transform_8(%arg0: i32) -> (i32, i32) {
    %c0_i32 = arith.constant 0 : i32
    %c0_i32_0 = arith.constant 0 : i32
    %c0_i32_1 = arith.constant 0 : i32
    return %c0_i32, %c0_i32_0 : i32, i32
  }
  func.func @transform_9(%arg0: i32) -> (i32, i32, i32) {
    %c0_i32 = arith.constant 0 : i32
    %c0_i32_0 = arith.constant 0 : i32
    %c0_i32_1 = arith.constant 0 : i32
    return %arg0, %c0_i32, %c0_i32_0 : i32, i32, i32
  }
}

</mosaic_0001>

<llo_original>
// kernel: enc_unit_last_pallas.1
$region0: #{enc_unit_last_pallas.1}
  #allocation0 [shape = 'u32[]', space=smem, size = 0x4, offset = 0x4, fixed_abs, tag = 'smem constant byte address 0x4 - core index']
  #allocation1 [shape = 'u32[144,128]{1,0:T(1,128)}', space=vmem, size = 0x12000, scoped, tag = 'internal scratch']
  #allocation2 [shape = 'f32[8,82]{1,0:T(8,128)}', space=vmem, size = 0x1000, scoped, tag = 'scratch operand']
  #allocation3 [shape = 'f32[200,64]{1,0:T(8,128)}', space=vmem, size = 0x19000, scoped, tag = 'scratch operand']
  #allocation4 [shape = 'f32[72,64]{1,0:T(8,128)}', space=vmem, size = 0x9000, scoped, tag = 'scratch operand']
  %s0 = inlined_call_operand.vmem [shape: f32[2,4,4,64], index: 0, kind: input, shape index: {}]
  %s1 = inlined_call_operand.vmem [shape: f32[8,200], index: 1, kind: input, shape index: {}]
  %s2 = inlined_call_operand.vmem [shape: f32[8,1], index: 2, kind: input, shape index: {}]
  %s3 = inlined_call_operand.vmem [shape: f32[4,8,72], index: 3, kind: input, shape index: {}]
  %s4 = inlined_call_operand.vmem [shape: f32[4,8,1], index: 4, kind: input, shape index: {}]
  %s5 = inlined_call_operand.vmem [shape: f32[8,72], index: 5, kind: input, shape index: {}]
  %s6 = inlined_call_operand.vmem [shape: f32[8,1], index: 6, kind: input, shape index: {}]
  %s7 = inlined_call_operand.vmem [shape: f32[4,8], index: 7, kind: input, shape index: {}]
  %s8 = inlined_call_operand.vmem [shape: f32[4,1], index: 8, kind: input, shape index: {}]
  %s9 = inlined_call_operand.vmem [shape: f32[2,4,64], index: 9, kind: output, shape index: {}]
  %s10 = sld [smem:[#allocation0]]
  $region69: #{enc_unit_last_pallas.1} parent=0
    _
  %s12 = ssub.s32 1, %s10
  %s13 = scalar_select 0, %s12, %s10
  loop: start=0, step=1, limit=4
  $region2: #{enc_unit_last_pallas.1} parent=0 // loop_pre_header
    _
  $region3: #{enc_unit_last_pallas.1} parent=0 // loop_header
    %s15 = sphi 0, %s19
    %p16 = scmp.ge.s32.totalorder %s15, 4
    %s25 = sphi 0, %s27
    %s28 = sphi 0, %s25
    %s29 = sphi 0, %s28
    %s45 = sphi 0, %s29
    %s49 = sphi 0, %s49
    %s51 = sphi 0, %s49
    %s52 = sphi 0, %s51
    %s66 = sphi 0, %s52
    %s70 = sphi 0, %s70
    %s72 = sphi 0, %s70
    %s73 = sphi 0, %s72
    %s87 = sphi 0, %s73
    %s91 = sphi 0, %s91
    %s93 = sphi 0, %s91
    %s94 = sphi 0, %s93
    %s108 = sphi 0, %s94
    %s112 = sphi 0, %s112
    %s114 = sphi 0, %s112
    %s115 = sphi 0, %s114
    %s129 = sphi 0, %s115
    %s133 = sphi 0, %s133
    %s135 = sphi 0, %s133
    %s136 = sphi 0, %s135
    %s150 = sphi 0, %s136
    %s154 = sphi 0, %s154
    %s156 = sphi 0, %s154
    %s157 = sphi 0, %s156
    %s171 = sphi 0, %s157
    %s175 = sphi 0, %s175
    %s177 = sphi 0, %s175
    %s178 = sphi 0, %s177
    %s192 = sphi 0, %s178
    %s196 = sphi 0, %s196
    %s198 = sphi 0, %s196
    %s199 = sphi 0, %s198
    %s213 = sphi 0, %s199
    %s219 = sphi 0, %s221
    %s222 = sphi 0, %s219
    %s223 = sphi 0, %s222
    %s239 = sphi 0, %s223
  $region4: #{enc_unit_last_pallas.1} parent=0 // loop_header_branch
    %18 = sbr.rel (%p16) target = $region8
  $region5: #{enc_unit_last_pallas.1} parent=0 // loop_body
    %s20 = ssub.s32 %s15, 1
    %s21 = ssub.s32 %s15, 2
    %s22 = sadd.s32 %s15, 1
    %s23 = ssub.s32 %s15, %s22
    %p24 = scmp.eq.s32.totalorder %s23, 0
    %s26 = sadd.s32 %s25, 1
    %s27 = scalar_select %p24, %s25, %s26
    %p30 = pneg %p24
    %p31 = scmp.eq.s32.totalorder %s15, 1
    %p32 = por %p30, %p31
    %p33 = scmp.ne.s32.totalorder %s25, %s28
    %p34 = scmp.eq.s32.totalorder %s15, 0
    %p35 = por %p33, %p34
    %p36 = scmp.ne.s32.totalorder %s25, %s28
    %p37 = scmp.eq.s32.totalorder %s20, 1
    %p38 = por %p36, %p37
    %p39 = scmp.ne.s32.totalorder %s28, %s29
    %p40 = scmp.eq.s32.totalorder %s20, 0
    %p41 = por %p39, %p40
    %p42 = scmp.ne.s32.totalorder %s28, %s29
    %p43 = scmp.eq.s32.totalorder %s21, 1
    %p44 = por %p42, %p43
    %p46 = scmp.ne.s32.totalorder %s29, %s45
    %p47 = scmp.eq.s32.totalorder %s21, 0
    %p48 = por %p46, %p47
    %s50 = sadd.s32 %s49, 1
    %p53 = scmp.eq.s32.totalorder %s15, 1
    %p54 = scmp.ne.s32.totalorder %s49, %s51
    %p55 = scmp.eq.s32.totalorder %s15, 0
    %p56 = por %p54, %p55
    %p57 = scmp.ne.s32.totalorder %s49, %s51
    %p58 = scmp.eq.s32.totalorder %s20, 1
    %p59 = por %p57, %p58
    %p60 = scmp.ne.s32.totalorder %s51, %s52
    %p61 = scmp.eq.s32.totalorder %s20, 0
    %p62 = por %p60, %p61
    %p63 = scmp.ne.s32.totalorder %s51, %s52
    %p64 = scmp.eq.s32.totalorder %s21, 1
    %p65 = por %p63, %p64
    %p67 = scmp.ne.s32.totalorder %s52, %s66
    %p68 = scmp.eq.s32.totalorder %s21, 0
    %p69 = por %p67, %p68
    %s71 = sadd.s32 %s70, 1
    %p74 = scmp.eq.s32.totalorder %s15, 1
    %p75 = scmp.ne.s32.totalorder %s70, %s72
    %p76 = scmp.eq.s32.totalorder %s15, 0
    %p77 = por %p75, %p76
    %p78 = scmp.ne.s32.totalorder %s70, %s72
    %p79 = scmp.eq.s32.totalorder %s20, 1
    %p80 = por %p78, %p79
    %p81 = scmp.ne.s32.totalorder %s72, %s73
    %p82 = scmp.eq.s32.totalorder %s20, 0
    %p83 = por %p81, %p82
    %p84 = scmp.ne.s32.totalorder %s72, %s73
    %p85 = scmp.eq.s32.totalorder %s21, 1
    %p86 = por %p84, %p85
    %p88 = scmp.ne.s32.totalorder %s73, %s87
    %p89 = scmp.eq.s32.totalorder %s21, 0
    %p90 = por %p88, %p89
    %s92 = sadd.s32 %s91, 1
    %p95 = scmp.eq.s32.totalorder %s15, 1
    %p96 = scmp.ne.s32.totalorder %s91, %s93
    %p97 = scmp.eq.s32.totalorder %s15, 0
    %p98 = por %p96, %p97
    %p99 = scmp.ne.s32.totalorder %s91, %s93
    %p100 = scmp.eq.s32.totalorder %s20, 1
    %p101 = por %p99, %p100
    %p102 = scmp.ne.s32.totalorder %s93, %s94
    %p103 = scmp.eq.s32.totalorder %s20, 0
    %p104 = por %p102, %p103
    %p105 = scmp.ne.s32.totalorder %s93, %s94
    %p106 = scmp.eq.s32.totalorder %s21, 1
    %p107 = por %p105, %p106
    %p109 = scmp.ne.s32.totalorder %s94, %s108
    %p110 = scmp.eq.s32.totalorder %s21, 0
    %p111 = por %p109, %p110
    %s113 = sadd.s32 %s112, 1
    %p116 = scmp.eq.s32.totalorder %s15, 1
    %p117 = scmp.ne.s32.totalorder %s112, %s114
    %p118 = scmp.eq.s32.totalorder %s15, 0
    %p119 = por %p117, %p118
    %p120 = scmp.ne.s32.totalorder %s112, %s114
    %p121 = scmp.eq.s32.totalorder %s20, 1
    %p122 = por %p120, %p121
    %p123 = scmp.ne.s32.totalorder %s114, %s115
    %p124 = scmp.eq.s32.totalorder %s20, 0
    %p125 = por %p123, %p124
    %p126 = scmp.ne.s32.totalorder %s114, %s115
    %p127 = scmp.eq.s32.totalorder %s21, 1
    %p128 = por %p126, %p127
    %p130 = scmp.ne.s32.totalorder %s115, %s129
    %p131 = scmp.eq.s32.totalorder %s21, 0
    %p132 = por %p130, %p131
    %s134 = sadd.s32 %s133, 1
    %p137 = scmp.eq.s32.totalorder %s15, 1
    %p138 = scmp.ne.s32.totalorder %s133, %s135
    %p139 = scmp.eq.s32.totalorder %s15, 0
    %p140 = por %p138, %p139
    %p141 = scmp.ne.s32.totalorder %s133, %s135
    %p142 = scmp.eq.s32.totalorder %s20, 1
    %p143 = por %p141, %p142
    %p144 = scmp.ne.s32.totalorder %s135, %s136
    %p145 = scmp.eq.s32.totalorder %s20, 0
    %p146 = por %p144, %p145
    %p147 = scmp.ne.s32.totalorder %s135, %s136
    %p148 = scmp.eq.s32.totalorder %s21, 1
    %p149 = por %p147, %p148
    %p151 = scmp.ne.s32.totalorder %s136, %s150
    %p152 = scmp.eq.s32.totalorder %s21, 0
    %p153 = por %p151, %p152
    %s155 = sadd.s32 %s154, 1
    %p158 = scmp.eq.s32.totalorder %s15, 1
    %p159 = scmp.ne.s32.totalorder %s154, %s156
    %p160 = scmp.eq.s32.totalorder %s15, 0
    %p161 = por %p159, %p160
    %p162 = scmp.ne.s32.totalorder %s154, %s156
    %p163 = scmp.eq.s32.totalorder %s20, 1
    %p164 = por %p162, %p163
    %p165 = scmp.ne.s32.totalorder %s156, %s157
    %p166 = scmp.eq.s32.totalorder %s20, 0
    %p167 = por %p165, %p166
    %p168 = scmp.ne.s32.totalorder %s156, %s157
    %p169 = scmp.eq.s32.totalorder %s21, 1
    %p170 = por %p168, %p169
    %p172 = scmp.ne.s32.totalorder %s157, %s171
    %p173 = scmp.eq.s32.totalorder %s21, 0
    %p174 = por %p172, %p173
    %s176 = sadd.s32 %s175, 1
    %p179 = scmp.eq.s32.totalorder %s15, 1
    %p180 = scmp.ne.s32.totalorder %s175, %s177
    %p181 = scmp.eq.s32.totalorder %s15, 0
    %p182 = por %p180, %p181
    %p183 = scmp.ne.s32.totalorder %s175, %s177
    %p184 = scmp.eq.s32.totalorder %s20, 1
    %p185 = por %p183, %p184
    %p186 = scmp.ne.s32.totalorder %s177, %s178
    %p187 = scmp.eq.s32.totalorder %s20, 0
    %p188 = por %p186, %p187
    %p189 = scmp.ne.s32.totalorder %s177, %s178
    %p190 = scmp.eq.s32.totalorder %s21, 1
    %p191 = por %p189, %p190
    %p193 = scmp.ne.s32.totalorder %s178, %s192
    %p194 = scmp.eq.s32.totalorder %s21, 0
    %p195 = por %p193, %p194
    %s197 = sadd.s32 %s196, 1
    %p200 = scmp.eq.s32.totalorder %s15, 1
    %p201 = scmp.ne.s32.totalorder %s196, %s198
    %p202 = scmp.eq.s32.totalorder %s15, 0
    %p203 = por %p201, %p202
    %p204 = scmp.ne.s32.totalorder %s196, %s198
    %p205 = scmp.eq.s32.totalorder %s20, 1
    %p206 = por %p204, %p205
    %p207 = scmp.ne.s32.totalorder %s198, %s199
    %p208 = scmp.eq.s32.totalorder %s20, 0
    %p209 = por %p207, %p208
    %p210 = scmp.ne.s32.totalorder %s198, %s199
    %p211 = scmp.eq.s32.totalorder %s21, 1
    %p212 = por %p210, %p211
    %p214 = scmp.ne.s32.totalorder %s199, %s213
    %p215 = scmp.eq.s32.totalorder %s21, 0
    %p216 = por %p214, %p215
    %s217 = ssub.s32 %s15, %s22
    %p218 = scmp.eq.s32.totalorder %s217, 0
    %s220 = sadd.s32 %s219, 1
    %s221 = scalar_select %p218, %s219, %s220
    %p224 = pneg %p218
    %p225 = scmp.eq.s32.totalorder %s15, 1
    %p226 = por %p224, %p225
    %p227 = scmp.ne.s32.totalorder %s219, %s222
    %p228 = scmp.eq.s32.totalorder %s15, 0
    %p229 = por %p227, %p228
    %p230 = scmp.ne.s32.totalorder %s219, %s222
    %p231 = scmp.eq.s32.totalorder %s20, 1
    %p232 = por %p230, %p231
    %p233 = scmp.ne.s32.totalorder %s222, %s223
    %p234 = scmp.eq.s32.totalorder %s20, 0
    %p235 = por %p233, %p234
    %p236 = scmp.ne.s32.totalorder %s222, %s223
    %p237 = scmp.eq.s32.totalorder %s21, 1
    %p238 = por %p236, %p237
    %p240 = scmp.ne.s32.totalorder %s223, %s239
    %p241 = scmp.eq.s32.totalorder %s21, 0
    %p242 = por %p240, %p241
    %p243 = scmp.le.s32.totalorder 1, %s15
    %p244 = scmp.lt.s32.totalorder %s15, 3
    %p245 = pnand %p243, %p244
    %p246 = pneg %p245
    // Predicated region
    $region9: #{enc_unit_last_pallas.1} parent=5 // pred_check
      _
    $region10: #{enc_unit_last_pallas.1} parent=5 // pred_check_branch
      %248 = sbr.rel (%p245) target = $region12
    $region11: #{enc_unit_last_pallas.1} parent=5 // pred_region
      %s249 = ssub.s32 %s15, 1
      // Predicated region
      $region13: #{enc_unit_last_pallas.1} parent=11 // pred_check
        %p250 = pneg %p62
      $region14: #{enc_unit_last_pallas.1} parent=11 // pred_check_branch
        %252 = sbr.rel (%p250) target = $region16
      $region15: #{enc_unit_last_pallas.1} parent=11 // pred_region
        _
      $region16: #{enc_unit_last_pallas.1} parent=11 // pred_fallthru
        _
      // Predicated region
      $region17: #{enc_unit_last_pallas.1} parent=11 // pred_check
        %p253 = pneg %p83
      $region18: #{enc_unit_last_pallas.1} parent=11 // pred_check_branch
        %255 = sbr.rel (%p253) target = $region20
      $region19: #{enc_unit_last_pallas.1} parent=11 // pred_region
        _
      $region20: #{enc_unit_last_pallas.1} parent=11 // pred_fallthru
        _
      // Predicated region
      $region21: #{enc_unit_last_pallas.1} parent=11 // pred_check
        %p256 = pneg %p104
      $region22: #{enc_unit_last_pallas.1} parent=11 // pred_check_branch
        %258 = sbr.rel (%p256) target = $region24
      $region23: #{enc_unit_last_pallas.1} parent=11 // pred_region
        _
      $region24: #{enc_unit_last_pallas.1} parent=11 // pred_fallthru
        _
      // Predicated region
      $region25: #{enc_unit_last_pallas.1} parent=11 // pred_check
        %p259 = pneg %p125
      $region26: #{enc_unit_last_pallas.1} parent=11 // pred_check_branch
        %261 = sbr.rel (%p259) target = $region28
      $region27: #{enc_unit_last_pallas.1} parent=11 // pred_region
        _
      $region28: #{enc_unit_last_pallas.1} parent=11 // pred_fallthru
        _
      // Predicated region
      $region29: #{enc_unit_last_pallas.1} parent=11 // pred_check
        %p262 = pneg %p146
      $region30: #{enc_unit_last_pallas.1} parent=11 // pred_check_branch
        %264 = sbr.rel (%p262) target = $region32
      $region31: #{enc_unit_last_pallas.1} parent=11 // pred_region
        _
      $region32: #{enc_unit_last_pallas.1} parent=11 // pred_fallthru
        _
      // Predicated region
      $region33: #{enc_unit_last_pallas.1} parent=11 // pred_check
        %p265 = pneg %p167
      $region34: #{enc_unit_last_pallas.1} parent=11 // pred_check_branch
        %267 = sbr.rel (%p265) target = $region36
      $region35: #{enc_unit_last_pallas.1} parent=11 // pred_region
        _
      $region36: #{enc_unit_last_pallas.1} parent=11 // pred_fallthru
        _
      // Predicated region
      $region37: #{enc_unit_last_pallas.1} parent=11 // pred_check
        %p268 = pneg %p188
      $region38: #{enc_unit_last_pallas.1} parent=11 // pred_check_branch
        %270 = sbr.rel (%p268) target = $region40
      $region39: #{enc_unit_last_pallas.1} parent=11 // pred_region
        _
      $region40: #{enc_unit_last_pallas.1} parent=11 // pred_fallthru
        _
      // Predicated region
      $region41: #{enc_unit_last_pallas.1} parent=11 // pred_check
        %p271 = pneg %p209
      $region42: #{enc_unit_last_pallas.1} parent=11 // pred_check_branch
        %273 = sbr.rel (%p271) target = $region44
      $region43: #{enc_unit_last_pallas.1} parent=11 // pred_region
        _
      $region44: #{enc_unit_last_pallas.1} parent=11 // pred_fallthru
        _
    $region12: #{enc_unit_last_pallas.1} parent=5 // pred_fallthru
      _
    %p274 = scmp.lt.s32.totalorder %s15, 2
    // Predicated region
    $region45: #{enc_unit_last_pallas.1} parent=5 // pred_check
      %p275 = pneg %p274
    $region46: #{enc_unit_last_pallas.1} parent=5 // pred_check_branch
      %277 = sbr.rel (%p275) target = $region48
    $region47: #{enc_unit_last_pallas.1} parent=5 // pred_region
      // Predicated region
      $region49: #{enc_unit_last_pallas.1} parent=47 // pred_check
        %p278 = pneg %p35
      $region50: #{enc_unit_last_pallas.1} parent=47 // pred_check_branch
        %280 = sbr.rel (%p278) target = $region52
      $region51: #{enc_unit_last_pallas.1} parent=47 // pred_region
        %p281 = scmp.lt.s32.totalorder %s15, 1
        %s282 = scalar_select %p281, %s15, 1
        %s283 = smul.addr %s282, 4
        %s284 = smul.addr %s283, 4
        %s285 = scalar_lea.vmem %s0, %s284
      $region52: #{enc_unit_last_pallas.1} parent=47 // pred_fallthru
        _
    $region48: #{enc_unit_last_pallas.1} parent=5 // pred_fallthru
      _
    %p286 = scmp.le.s32.totalorder 1, %s15
    %p287 = scmp.lt.s32.totalorder %s15, 3
    %p288 = pnand %p286, %p287
    %p289 = pneg %p288
    // Predicated region
    $region53: #{enc_unit_last_pallas.1} parent=5 // pred_check
      _
    $region54: #{enc_unit_last_pallas.1} parent=5 // pred_check_branch
      %291 = sbr.rel (%p288) target = $region56
    $region55: #{enc_unit_last_pallas.1} parent=5 // pred_region
      %s292 = ssub.s32 %s15, 1
      %p293 = scmp.lt.s32.totalorder %s20, 1
      %s294 = scalar_select %p293, %s20, 1
      %s295 = smul.addr %s294, 4
      %s296 = smul.addr %s295, 4
      %s297 = scalar_lea.vmem %s0, %s296
      %p298 = pneg %p41
      %p299 = pneg %p38
      %p300 = pneg %p62
      %p301 = pneg %p59
      %p302 = pneg %p83
      %p303 = pneg %p80
      %p304 = pneg %p104
      %p305 = pneg %p101
      %p306 = pneg %p125
      %p307 = pneg %p122
      %p308 = pneg %p146
      %p309 = pneg %p143
      %p310 = pneg %p167
      %p311 = pneg %p164
      %p312 = pneg %p188
      %p313 = pneg %p185
      %p314 = pneg %p209
      %p315 = pneg %p206
      %p316 = pneg %p235
      %p317 = pneg %p232
      %p318 = scmp.lt.s32.totalorder %s20, 1
      %s319 = scalar_select %p318, %s20, 1
      %s320 = smul.addr %s319, 4
      %s321 = scalar_lea.vmem %s9, %s320
      %p322 = scmp.lt.s32.totalorder %s20, 1
      %s323 = scalar_select %p322, %s20, 1
      %s324 = smul.addr %s323, 4
      %s325 = smul.addr %s324, 4
      %s326 = scalar_lea.vmem %s0, %s325
      %p327 = scmp.lt.s32.totalorder %s20, 1
      %s328 = scalar_select %p327, %s20, 1
      %s329 = smul.addr %s328, 4
      %s330 = scalar_lea.vmem %s9, %s329
      %v331 = vlaneseq
      %v332 = vand.u32 %v331, 127
      %v333 = vand.u32 %v332, 7
      %vm334 = vcmp.ge.s32.totalorder %v333, 1
      %vm335 = vcmp.le.s32.totalorder %v333, 6
      %vm336 = vcmask 670720
      %337 = vst.msk [vmem:[#allocation2] sm:$0xff] %vm336, 0.0
      %vm338 = vcmask 523264
      %339 = vst.msk [vmem:[#allocation3] sm:$0xff] %vm338, 0.0
      %340 = vst.msk [vmem:[#allocation3 + $0x8] sm:$0xff] %vm338, 0.0
      %341 = vst.msk [vmem:[#allocation3 + $0x10] sm:$0xff] %vm338, 0.0
      %342 = vst.msk [vmem:[#allocation3 + $0x18] sm:$0xff] %vm338, 0.0
      %343 = vst.msk [vmem:[#allocation3 + $0x20] sm:$0xff] %vm338, 0.0
      %344 = vst.msk [vmem:[#allocation3 + $0x28] sm:$0xff] %vm338, 0.0
      %345 = vst.msk [vmem:[#allocation3 + $0x30] sm:$0xff] %vm338, 0.0
      %346 = vst.msk [vmem:[#allocation3 + $0x38] sm:$0xff] %vm338, 0.0
      %347 = vst.msk [vmem:[#allocation3 + $0x40] sm:$0xff] %vm338, 0.0
      %348 = vst.msk [vmem:[#allocation3 + $0x48] sm:$0xff] %vm338, 0.0
      %349 = vst.msk [vmem:[#allocation3 + $0x50] sm:$0xff] %vm338, 0.0
      %350 = vst.msk [vmem:[#allocation3 + $0x58] sm:$0xff] %vm338, 0.0
      %351 = vst.msk [vmem:[#allocation3 + $0x60] sm:$0xff] %vm338, 0.0
      %352 = vst.msk [vmem:[#allocation3 + $0x68] sm:$0xff] %vm338, 0.0
      %353 = vst.msk [vmem:[#allocation3 + $0x70] sm:$0xff] %vm338, 0.0
      %354 = vst.msk [vmem:[#allocation3 + $0x78] sm:$0xff] %vm338, 0.0
      %355 = vst.msk [vmem:[#allocation3 + $0x80] sm:$0xff] %vm338, 0.0
      %356 = vst.msk [vmem:[#allocation3 + $0x88] sm:$0xff] %vm338, 0.0
      %357 = vst.msk [vmem:[#allocation3 + $0x90] sm:$0xff] %vm338, 0.0
      %358 = vst.msk [vmem:[#allocation3 + $0x98] sm:$0xff] %vm338, 0.0
      %359 = vst.msk [vmem:[#allocation3 + $0xa0] sm:$0xff] %vm338, 0.0
      %360 = vst.msk [vmem:[#allocation3 + $0xa8] sm:$0xff] %vm338, 0.0
      %361 = vst.msk [vmem:[#allocation3 + $0xb0] sm:$0xff] %vm338, 0.0
      %362 = vst.msk [vmem:[#allocation3 + $0xb8] sm:$0xff] %vm338, 0.0
      %363 = vst.msk [vmem:[#allocation3 + $0xc0] sm:$0xff] %vm338, 0.0
      %364 = vst.msk [vmem:[#allocation4] sm:$0xff] %vm338, 0.0
      %365 = vst.msk [vmem:[#allocation4 + $0x8] sm:$0xff] %vm338, 0.0
      %366 = vst.msk [vmem:[#allocation4 + $0x10] sm:$0xff] %vm338, 0.0
      %367 = vst.msk [vmem:[#allocation4 + $0x18] sm:$0xff] %vm338, 0.0
      %368 = vst.msk [vmem:[#allocation4 + $0x20] sm:$0xff] %vm338, 0.0
      %369 = vst.msk [vmem:[#allocation4 + $0x28] sm:$0xff] %vm338, 0.0
      %370 = vst.msk [vmem:[#allocation4 + $0x30] sm:$0xff] %vm338, 0.0
      %371 = vst.msk [vmem:[#allocation4 + $0x38] sm:$0xff] %vm338, 0.0
      %372 = vst.msk [vmem:[#allocation4 + $0x40] sm:$0xff] %vm338, 0.0
      %v373 = vld [vmem:[%s326] sm:$0xf]
      %375 = vrot.lane.b32.xlu0 %v373, 9
      %v376 = vpop.permute.xlu0 %375
      %vm378 = vcmask 592968
      %379 = vst.msk [vmem:[#allocation2] sm:$0xf] %vm378, %v376
      %v380 = vld [vmem:[#allocation2] sm:$0xf]
      %v381 = vsel %vm334, 1, 0
      %vm382 = vcmp.eq.s32.totalorder %v381, 1
      %v383 = vsel %vm382, %v380, 0.0
      %vm384 = vcmask 519168
      %385 = vst.msk [vmem:[#allocation3] sm:$0xf] %vm384, %v383
      %v386 = vld [vmem:[#allocation2] sm:$0xf]
      %388 = vrot.lane.b32.xlu0 %v386, 127
      %v389 = vpop.permute.xlu0 %388
      %391 = vst.msk [vmem:[#allocation3 + $0x10] sm:$0xf] %vm384, %v389
      %v392 = vld [vmem:[#allocation2] sm:$0xf]
      %v393 = vsel %vm335, 1, 0
      %vm394 = vcmp.eq.s32.totalorder %v393, 1
      %396 = vrot.lane.b32.xlu0 %v392, 126
      %v397 = vpop.permute.xlu0 %396
      %v399 = vsel %vm394, %v397, 0.0
      %400 = vst.msk [vmem:[#allocation3 + $0x20] sm:$0xf] %vm384, %v399
      %v401 = vld [vmem:[#allocation2] sm:$0xf]
      %403 = vrot.lane.b32.xlu0 %v401, 120
      %v404 = vpop.permute.xlu0 %403
      %v406 = vsel %vm382, %v404, 0.0
      %407 = vst.msk [vmem:[#allocation3 + $0x50] sm:$0xf] %vm384, %v406
      %v408 = vld [vmem:[#allocation2] sm:$0xf]
      %410 = vrot.lane.b32.xlu0 %v408, 119
      %v411 = vpop.permute.xlu0 %410
      %413 = vst.msk [vmem:[#allocation3 + $0x60] sm:$0xf] %vm384, %v411
      %v414 = vld [vmem:[#allocation2] sm:$0xf]
      %416 = vrot.lane.b32.xlu0 %v414, 118
      %v417 = vpop.permute.xlu0 %416
      %v419 = vsel %vm394, %v417, 0.0
      %420 = vst.msk [vmem:[#allocation3 + $0x70] sm:$0xf] %vm384, %v419
      %v421 = vld [vmem:[#allocation2] sm:$0xf]
      %423 = vrot.lane.b32.xlu0 %v421, 112
      %v424 = vpop.permute.xlu0 %423
      %v426 = vsel %vm382, %v424, 0.0
      %427 = vst.msk [vmem:[#allocation3 + $0xa0] sm:$0xf] %vm384, %v426
      %v428 = vld [vmem:[#allocation2] sm:$0xf]
      %430 = vrot.lane.b32.xlu0 %v428, 111
      %v431 = vpop.permute.xlu0 %430
      %433 = vst.msk [vmem:[#allocation3 + $0xb0] sm:$0xf] %vm384, %v431
      %v434 = vld [vmem:[#allocation2] sm:$0xf]
      %436 = vrot.lane.b32.xlu0 %v434, 110
      %v437 = vpop.permute.xlu0 %436
      %v439 = vsel %vm394, %v437, 0.0
      %440 = vst.msk [vmem:[#allocation3 + $0xc0] sm:$0xf] %vm384, %v439
      %s441 = scalar_lea.vmem %s326, 4
      %v442 = vld [vmem:[%s441] sm:$0xf]
      %444 = vrot.lane.b32.xlu0 %v442, 9
      %v445 = vpop.permute.xlu0 %444
      %447 = vst.msk [vmem:[#allocation2] sm:$0xf] %vm378, %v445
      %v448 = vld [vmem:[#allocation2] sm:$0xf]
      %v449 = vsel %vm382, %v448, 0.0
      %450 = vst.msk [vmem:[#allocation3 + $0x8] sm:$0xf] %vm384, %v449
      %v451 = vld [vmem:[#allocation2] sm:$0xf]
      %453 = vrot.lane.b32.xlu0 %v451, 127
      %v454 = vpop.permute.xlu0 %453
      %456 = vst.msk [vmem:[#allocation3 + $0x18] sm:$0xf] %vm384, %v454
      %v457 = vld [vmem:[#allocation2] sm:$0xf]
      %459 = vrot.lane.b32.xlu0 %v457, 120
      %v460 = vpop.permute.xlu0 %459
      %v462 = vsel %vm382, %v460, 0.0
      %463 = vst.msk [vmem:[#allocation3 + $0x58] sm:$0xf] %vm384, %v462
      %v464 = vld [vmem:[#allocation2] sm:$0xf]
      %466 = vrot.lane.b32.xlu0 %v464, 119
      %v467 = vpop.permute.xlu0 %466
      %469 = vst.msk [vmem:[#allocation3 + $0x68] sm:$0xf] %vm384, %v467
      %v470 = vld [vmem:[#allocation2] sm:$0xf]
      %472 = vrot.lane.b32.xlu0 %v470, 112
      %v473 = vpop.permute.xlu0 %472
      %v475 = vsel %vm382, %v473, 0.0
      %476 = vst.msk [vmem:[#allocation3 + $0xa8] sm:$0xf] %vm384, %v475
      %v477 = vld [vmem:[#allocation2] sm:$0xf]
      %479 = vrot.lane.b32.xlu0 %v477, 111
      %v480 = vpop.permute.xlu0 %479
      %482 = vst.msk [vmem:[#allocation3 + $0xb8] sm:$0xf] %vm384, %v480
      %s483 = scalar_lea.vmem %s326, 8
      %v484 = vld [vmem:[%s483] sm:$0xf]
      %486 = vrot.lane.b32.xlu0 %v484, 9
      %v487 = vpop.permute.xlu0 %486
      %489 = vst.msk [vmem:[#allocation2] sm:$0xf] %vm378, %v487
      %v490 = vld [vmem:[#allocation2] sm:$0xf]
      %v491 = vsel %vm382, %v490, 0.0
      %492 = vst.msk [vmem:[#allocation3 + $0x28] sm:$0xf] %vm384, %v491
      %v493 = vld [vmem:[#allocation2] sm:$0xf]
      %495 = vrot.lane.b32.xlu0 %v493, 127
      %v496 = vpop.permute.xlu0 %495
      %498 = vst.msk [vmem:[#allocation3 + $0x38] sm:$0xf] %vm384, %v496
      %v499 = vld [vmem:[#allocation2] sm:$0xf]
      %501 = vrot.lane.b32.xlu0 %v499, 126
      %v502 = vpop.permute.xlu0 %501
      %v504 = vsel %vm394, %v502, 0.0
      %505 = vst.msk [vmem:[#allocation3 + $0x48] sm:$0xf] %vm384, %v504
      %v506 = vld [vmem:[#allocation2] sm:$0xf]
      %508 = vrot.lane.b32.xlu0 %v506, 120
      %v509 = vpop.permute.xlu0 %508
      %v511 = vsel %vm382, %v509, 0.0
      %512 = vst.msk [vmem:[#allocation3 + $0x78] sm:$0xf] %vm384, %v511
      %v513 = vld [vmem:[#allocation2] sm:$0xf]
      %515 = vrot.lane.b32.xlu0 %v513, 119
      %v516 = vpop.permute.xlu0 %515
      %518 = vst.msk [vmem:[#allocation3 + $0x88] sm:$0xf] %vm384, %v516
      %v519 = vld [vmem:[#allocation2] sm:$0xf]
      %521 = vrot.lane.b32.xlu0 %v519, 118
      %v522 = vpop.permute.xlu0 %521
      %v524 = vsel %vm394, %v522, 0.0
      %525 = vst.msk [vmem:[#allocation3 + $0x98] sm:$0xf] %vm384, %v524
      %s526 = scalar_lea.vmem %s326, 12
      %v527 = vld [vmem:[%s526] sm:$0xf]
      %529 = vrot.lane.b32.xlu0 %v527, 9
      %v530 = vpop.permute.xlu0 %529
      %532 = vst.msk [vmem:[#allocation2] sm:$0xf] %vm378, %v530
      %v533 = vld [vmem:[#allocation2] sm:$0xf]
      %v534 = vsel %vm382, %v533, 0.0
      %535 = vst.msk [vmem:[#allocation3 + $0x30] sm:$0xf] %vm384, %v534
      %v536 = vld [vmem:[#allocation2] sm:$0xf]
      %538 = vrot.lane.b32.xlu0 %v536, 127
      %v539 = vpop.permute.xlu0 %538
      %541 = vst.msk [vmem:[#allocation3 + $0x40] sm:$0xf] %vm384, %v539
      %v542 = vld [vmem:[#allocation2] sm:$0xf]
      %544 = vrot.lane.b32.xlu0 %v542, 120
      %v545 = vpop.permute.xlu0 %544
      %v547 = vsel %vm382, %v545, 0.0
      %548 = vst.msk [vmem:[#allocation3 + $0x80] sm:$0xf] %vm384, %v547
      %v549 = vld [vmem:[#allocation2] sm:$0xf]
      %551 = vrot.lane.b32.xlu0 %v549, 119
      %v552 = vpop.permute.xlu0 %551
      %554 = vst.msk [vmem:[#allocation3 + $0x90] sm:$0xf] %vm384, %v552
      %v555 = vld [vmem:[%s1] sm:$0xff]
      %v556 = vld [vmem:[%s1 + $0x8] sm:$0xff]
      %v557 = vld [vmem:[#allocation3] sm:$0xff]
      %v558 = vld [vmem:[#allocation3 + $0x8] sm:$0xff]
      %v559 = vld [vmem:[#allocation3 + $0x10] sm:$0xff]
      %v560 = vld [vmem:[#allocation3 + $0x18] sm:$0xff]
      %v561 = vld [vmem:[#allocation3 + $0x20] sm:$0xff]
      %v562 = vld [vmem:[#allocation3 + $0x28] sm:$0xff]
      %v563 = vld [vmem:[#allocation3 + $0x30] sm:$0xff]
      %v564 = vld [vmem:[#allocation3 + $0x38] sm:$0xff]
      %v565 = vld [vmem:[#allocation3 + $0x40] sm:$0xff]
      %v566 = vld [vmem:[#allocation3 + $0x48] sm:$0xff]
      %v567 = vld [vmem:[#allocation3 + $0x50] sm:$0xff]
      %v568 = vld [vmem:[#allocation3 + $0x58] sm:$0xff]
      %v569 = vld [vmem:[#allocation3 + $0x60] sm:$0xff]
      %v570 = vld [vmem:[#allocation3 + $0x68] sm:$0xff]
      %v571 = vld [vmem:[#allocation3 + $0x70] sm:$0xff]
      %v572 = vld [vmem:[#allocation3 + $0x78] sm:$0xff]
      %v573 = vld [vmem:[#allocation3 + $0x80] sm:$0xff]
      %v574 = vld [vmem:[#allocation3 + $0x88] sm:$0xff]
      %v575 = vld [vmem:[#allocation3 + $0x90] sm:$0xff]
      %v576 = vld [vmem:[#allocation3 + $0x98] sm:$0xff]
      %v577 = vld [vmem:[#allocation3 + $0xa0] sm:$0xff]
      %v578 = vld [vmem:[#allocation3 + $0xa8] sm:$0xff]
      %v579 = vld [vmem:[#allocation3 + $0xb0] sm:$0xff]
      %v580 = vld [vmem:[#allocation3 + $0xb8] sm:$0xff]
      %v581 = vld [vmem:[#allocation3 + $0xc0] sm:$0xff]
      %v582 = vld [vmem:[%s2] sm:$0xff]
      %584 = vset.pattern.permute.xlu0 0
      %585 = vperm.xlu0 %584, %v582
      %v586 = vpop.permute.xlu0 %585
      %vm588 = vcmask 588800
      %v590 = vsel %vm588, %v556, 0
      %592 = vmatprep.subr.mxu0 0.0
      %593 = vmatpush1.msra.mxu0 %v572
      %594 = vmatprep.subr.mxu0 0.0
      %595 = vmatpush1.msra.mxu0 %v571
      %596 = vmatprep.subr.mxu0 0.0
      %597 = vmatpush1.msra.mxu0 %v570
      %598 = vmatprep.subr.mxu0 0.0
      %599 = vmatpush1.msra.mxu0 %v569
      %600 = vmatprep.subr.mxu0 0.0
      %601 = vmatpush1.msra.mxu0 %v568
      %602 = vmatprep.subr.mxu0 0.0
      %603 = vmatpush1.msra.mxu0 %v567
      %604 = vmatprep.subr.mxu0 0.0
      %605 = vmatpush1.msra.mxu0 %v566
      %606 = vmatprep.subr.mxu0 0.0
      %607 = vmatpush1.msra.mxu0 %v565
      %608 = vmatprep.subr.mxu0 0.0
      %609 = vmatpush1.msra.mxu0 %v564
      %610 = vmatprep.subr.mxu0 0.0
      %611 = vmatpush1.msra.mxu0 %v563
      %612 = vmatprep.subr.mxu0 0.0
      %613 = vmatpush1.msra.mxu0 %v562
      %614 = vmatprep.subr.mxu0 0.0
      %615 = vmatpush1.msra.mxu0 %v561
      %616 = vmatprep.subr.mxu0 0.0
      %617 = vmatpush1.msra.mxu0 %v560
      %618 = vmatprep.subr.mxu0 0.0
      %619 = vmatpush1.msra.mxu0 %v559
      %620 = vmatprep.subr.mxu0 0.0
      %621 = vmatpush1.msra.mxu0 %v558
      %622 = vmatprep.subr.mxu0 0.0
      %623 = vmatpush1.msra.mxu0 %v557
      %624 = vmatprep.subr.mxu0 0.0
      %625 = vmatpush2.msra.mxu0 0.0
      %626 = vmatprep.subr.mxu0 0.0
      %627 = vmatpush2.msra.mxu0 0.0
      %628 = vmatprep.subr.mxu0 0.0
      %629 = vmatpush2.msra.mxu0 0.0
      %630 = vmatprep.subr.mxu0 0.0
      %631 = vmatpush2.msra.mxu0 0.0
      %632 = vmatprep.subr.mxu0 0.0
      %633 = vmatpush2.msra.mxu0 0.0
      %634 = vmatprep.subr.mxu0 0.0
      %635 = vmatpush2.msra.mxu0 0.0
      %636 = vmatprep.subr.mxu0 0.0
      %637 = vmatpush2.msra.mxu0 0.0
      %638 = vmatprep.subr.mxu0 0.0
      %639 = vmatpush2.msra.mxu0 %v581
      %640 = vmatprep.subr.mxu0 0.0
      %641 = vmatpush2.msra.mxu0 %v580
      %642 = vmatprep.subr.mxu0 0.0
      %643 = vmatpush2.msra.mxu0 %v579
      %644 = vmatprep.subr.mxu0 0.0
      %645 = vmatpush2.msra.mxu0 %v578
      %646 = vmatprep.subr.mxu0 0.0
      %647 = vmatpush2.msra.mxu0 %v577
      %648 = vmatprep.subr.mxu0 0.0
      %649 = vmatpush2.msra.mxu0 %v576
      %650 = vmatprep.subr.mxu0 0.0
      %651 = vmatpush2.msra.mxu0 %v575
      %652 = vmatprep.subr.mxu0 0.0
      %653 = vmatpush2.msra.mxu0 %v574
      %654 = vmatprep.subr.mxu0 0.0
      %655 = vmatpush2.msra.mxu0 %v573
      %656 = vmatprep.mubr.f32.mxu0 %v590
      %657 = vmatmul.mubr.f32.gmra.mxu0 %v555
      %v658 = vpop.f32.mrf.mxu0
      %v659 = vadd.f32 %v586, %v658
      %v660 = vpop.f32.mrf.mxu0
      %661 = vdwg.mxu0
      %v662 = vld [vmem:[%s3] sm:$0xff]
      %v663 = vld [vmem:[%s4] sm:$0xff]
      %665 = vrot.lane.b32.xlu0 %v659, 9
      %v666 = vpop.permute.xlu0 %665
      %vm668 = vcmask 597064
      %669 = vst.msk [vmem:[#allocation2] sm:$0xff] %vm668, %v666
      %v670 = vld [vmem:[#allocation2] sm:$0xff]
      %v671 = vsel %vm382, %v670, 0.0
      %672 = vst.msk [vmem:[#allocation4] sm:$0xff] %vm338, %v671
      %v673 = vld [vmem:[#allocation2] sm:$0xff]
      %675 = vrot.lane.b32.xlu0 %v673, 127
      %v676 = vpop.permute.xlu0 %675
      %678 = vst.msk [vmem:[#allocation4 + $0x8] sm:$0xff] %vm338, %v676
      %v679 = vld [vmem:[#allocation2] sm:$0xff]
      %681 = vrot.lane.b32.xlu0 %v679, 126
      %v682 = vpop.permute.xlu0 %681
      %v684 = vsel %vm394, %v682, 0.0
      %685 = vst.msk [vmem:[#allocation4 + $0x10] sm:$0xff] %vm338, %v684
      %v686 = vld [vmem:[#allocation2] sm:$0xff]
      %688 = vrot.lane.b32.xlu0 %v686, 120
      %v689 = vpop.permute.xlu0 %688
      %v691 = vsel %vm382, %v689, 0.0
      %692 = vst.msk [vmem:[#allocation4 + $0x18] sm:$0xff] %vm338, %v691
      %v693 = vld [vmem:[#allocation2] sm:$0xff]
      %695 = vrot.lane.b32.xlu0 %v693, 119
      %v696 = vpop.permute.xlu0 %695
      %698 = vst.msk [vmem:[#allocation4 + $0x20] sm:$0xff] %vm338, %v696
      %v699 = vld [vmem:[#allocation2] sm:$0xff]
      %701 = vrot.lane.b32.xlu0 %v699, 118
      %v702 = vpop.permute.xlu0 %701
      %v704 = vsel %vm394, %v702, 0.0
      %705 = vst.msk [vmem:[#allocation4 + $0x28] sm:$0xff] %vm338, %v704
      %v706 = vld [vmem:[#allocation2] sm:$0xff]
      %708 = vrot.lane.b32.xlu0 %v706, 112
      %v709 = vpop.permute.xlu0 %708
      %v711 = vsel %vm382, %v709, 0.0
      %712 = vst.msk [vmem:[#allocation4 + $0x30] sm:$0xff] %vm338, %v711
      %v713 = vld [vmem:[#allocation2] sm:$0xff]
      %715 = vrot.lane.b32.xlu0 %v713, 111
      %v716 = vpop.permute.xlu0 %715
      %718 = vst.msk [vmem:[#allocation4 + $0x38] sm:$0xff] %vm338, %v716
      %v719 = vld [vmem:[#allocation2] sm:$0xff]
      %721 = vrot.lane.b32.xlu0 %v719, 110
      %v722 = vpop.permute.xlu0 %721
      %v724 = vsel %vm394, %v722, 0.0
      %725 = vst.msk [vmem:[#allocation4 + $0x40] sm:$0xff] %vm338, %v724
      %v726 = vld [vmem:[#allocation4] sm:$0xff]
      %v727 = vld [vmem:[#allocation4 + $0x8] sm:$0xff]
      %v728 = vld [vmem:[#allocation4 + $0x10] sm:$0xff]
      %v729 = vld [vmem:[#allocation4 + $0x18] sm:$0xff]
      %v730 = vld [vmem:[#allocation4 + $0x20] sm:$0xff]
      %v731 = vld [vmem:[#allocation4 + $0x28] sm:$0xff]
      %v732 = vld [vmem:[#allocation4 + $0x30] sm:$0xff]
      %v733 = vld [vmem:[#allocation4 + $0x38] sm:$0xff]
      %v734 = vld [vmem:[#allocation4 + $0x40] sm:$0xff]
      %736 = vset.pattern.permute.xlu0 0
      %737 = vperm.xlu0 %736, %v663
      %v738 = vpop.permute.xlu0 %737
      %v741 = vsel %vm588, %v662, 0
      %743 = vmatprep.subr.mxu0 0.0
      %744 = vmatpush1.msra.mxu0 0.0
      %745 = vmatprep.subr.mxu0 0.0
      %746 = vmatpush1.msra.mxu0 0.0
      %747 = vmatprep.subr.mxu0 0.0
      %748 = vmatpush1.msra.mxu0 0.0
      %749 = vmatprep.subr.mxu0 0.0
      %750 = vmatpush1.msra.mxu0 0.0
      %751 = vmatprep.subr.mxu0 0.0
      %752 = vmatpush1.msra.mxu0 0.0
      %753 = vmatprep.subr.mxu0 0.0
      %754 = vmatpush1.msra.mxu0 0.0
      %755 = vmatprep.subr.mxu0 0.0
      %756 = vmatpush1.msra.mxu0 0.0
      %757 = vmatprep.subr.mxu0 0.0
      %758 = vmatpush1.msra.mxu0 %v734
      %759 = vmatprep.subr.mxu0 0.0
      %760 = vmatpush1.msra.mxu0 %v733
      %761 = vmatprep.subr.mxu0 0.0
      %762 = vmatpush1.msra.mxu0 %v732
      %763 = vmatprep.subr.mxu0 0.0
      %764 = vmatpush1.msra.mxu0 %v731
      %765 = vmatprep.subr.mxu0 0.0
      %766 = vmatpush1.msra.mxu0 %v730
      %767 = vmatprep.subr.mxu0 0.0
      %768 = vmatpush1.msra.mxu0 %v729
      %769 = vmatprep.subr.mxu0 0.0
      %770 = vmatpush1.msra.mxu0 %v728
      %771 = vmatprep.subr.mxu0 0.0
      %772 = vmatpush1.msra.mxu0 %v727
      %773 = vmatprep.subr.mxu0 0.0
      %774 = vmatpush1.msra.mxu0 %v726
      %775 = vmatprep.subr.mxu0 0.0
      %776 = vmatpush2.msra.mxu0 0.0
      %777 = vmatprep.subr.mxu0 0.0
      %778 = vmatpush2.msra.mxu0 0.0
      %779 = vmatprep.subr.mxu0 0.0
      %780 = vmatpush2.msra.mxu0 0.0
      %781 = vmatprep.subr.mxu0 0.0
      %782 = vmatpush2.msra.mxu0 0.0
      %783 = vmatprep.subr.mxu0 0.0
      %784 = vmatpush2.msra.mxu0 0.0
      %785 = vmatprep.subr.mxu0 0.0
      %786 = vmatpush2.msra.mxu0 0.0
      %787 = vmatprep.subr.mxu0 0.0
      %788 = vmatpush2.msra.mxu0 0.0
      %789 = vmatprep.subr.mxu0 0.0
      %790 = vmatpush2.msra.mxu0 0.0
      %791 = vmatprep.subr.mxu0 0.0
      %792 = vmatpush2.msra.mxu0 0.0
      %793 = vmatprep.subr.mxu0 0.0
      %794 = vmatpush2.msra.mxu0 0.0
      %795 = vmatprep.subr.mxu0 0.0
      %796 = vmatpush2.msra.mxu0 0.0
      %797 = vmatprep.subr.mxu0 0.0
      %798 = vmatpush2.msra.mxu0 0.0
      %799 = vmatprep.subr.mxu0 0.0
      %800 = vmatpush2.msra.mxu0 0.0
      %801 = vmatprep.subr.mxu0 0.0
      %802 = vmatpush2.msra.mxu0 0.0
      %803 = vmatprep.subr.mxu0 0.0
      %804 = vmatpush2.msra.mxu0 0.0
      %805 = vmatprep.subr.mxu0 0.0
      %806 = vmatpush2.msra.mxu0 0.0
      %807 = vmatprep.mubr.f32.mxu0 0.0
      %808 = vmatmul.mubr.f32.gmra.mxu0 %v741
      %v809 = vpop.f32.mrf.mxu0
      %v810 = vadd.f32 %v738, %v809
      %v811 = vpop.f32.mrf.mxu0
      %812 = vdwg.mxu0
      %v813 = vmax.f32 %v810, 0.0
      %s814 = scalar_lea.vmem %s3, 8
      %v815 = vld [vmem:[%s814] sm:$0xff]
      %s816 = scalar_lea.vmem %s4, 8
      %v817 = vld [vmem:[%s816] sm:$0xff]
      %819 = vrot.lane.b32.xlu0 %v813, 9
      %v820 = vpop.permute.xlu0 %819
      %822 = vst.msk [vmem:[#allocation2] sm:$0xff] %vm668, %v820
      %v823 = vld [vmem:[#allocation2] sm:$0xff]
      %v824 = vsel %vm382, %v823, 0.0
      %825 = vst.msk [vmem:[#allocation4] sm:$0xff] %vm338, %v824
      %v826 = vld [vmem:[#allocation2] sm:$0xff]
      %828 = vrot.lane.b32.xlu0 %v826, 127
      %v829 = vpop.permute.xlu0 %828
      %831 = vst.msk [vmem:[#allocation4 + $0x8] sm:$0xff] %vm338, %v829
      %v832 = vld [vmem:[#allocation2] sm:$0xff]
      %834 = vrot.lane.b32.xlu0 %v832, 126
      %v835 = vpop.permute.xlu0 %834
      %v837 = vsel %vm394, %v835, 0.0
      %838 = vst.msk [vmem:[#allocation4 + $0x10] sm:$0xff] %vm338, %v837
      %v839 = vld [vmem:[#allocation2] sm:$0xff]
      %841 = vrot.lane.b32.xlu0 %v839, 120
      %v842 = vpop.permute.xlu0 %841
      %v844 = vsel %vm382, %v842, 0.0
      %845 = vst.msk [vmem:[#allocation4 + $0x18] sm:$0xff] %vm338, %v844
      %v846 = vld [vmem:[#allocation2] sm:$0xff]
      %848 = vrot.lane.b32.xlu0 %v846, 119
      %v849 = vpop.permute.xlu0 %848
      %851 = vst.msk [vmem:[#allocation4 + $0x20] sm:$0xff] %vm338, %v849
      %v852 = vld [vmem:[#allocation2] sm:$0xff]
      %854 = vrot.lane.b32.xlu0 %v852, 118
      %v855 = vpop.permute.xlu0 %854
      %v857 = vsel %vm394, %v855, 0.0
      %858 = vst.msk [vmem:[#allocation4 + $0x28] sm:$0xff] %vm338, %v857
      %v859 = vld [vmem:[#allocation2] sm:$0xff]
      %861 = vrot.lane.b32.xlu0 %v859, 112
      %v862 = vpop.permute.xlu0 %861
      %v864 = vsel %vm382, %v862, 0.0
      %865 = vst.msk [vmem:[#allocation4 + $0x30] sm:$0xff] %vm338, %v864
      %v866 = vld [vmem:[#allocation2] sm:$0xff]
      %868 = vrot.lane.b32.xlu0 %v866, 111
      %v869 = vpop.permute.xlu0 %868
      %871 = vst.msk [vmem:[#allocation4 + $0x38] sm:$0xff] %vm338, %v869
      %v872 = vld [vmem:[#allocation2] sm:$0xff]
      %874 = vrot.lane.b32.xlu0 %v872, 110
      %v875 = vpop.permute.xlu0 %874
      %v877 = vsel %vm394, %v875, 0.0
      %878 = vst.msk [vmem:[#allocation4 + $0x40] sm:$0xff] %vm338, %v877
      %v879 = vld [vmem:[#allocation4] sm:$0xff]
      %v880 = vld [vmem:[#allocation4 + $0x8] sm:$0xff]
      %v881 = vld [vmem:[#allocation4 + $0x10] sm:$0xff]
      %v882 = vld [vmem:[#allocation4 + $0x18] sm:$0xff]
      %v883 = vld [vmem:[#allocation4 + $0x20] sm:$0xff]
      %v884 = vld [vmem:[#allocation4 + $0x28] sm:$0xff]
      %v885 = vld [vmem:[#allocation4 + $0x30] sm:$0xff]
      %v886 = vld [vmem:[#allocation4 + $0x38] sm:$0xff]
      %v887 = vld [vmem:[#allocation4 + $0x40] sm:$0xff]
      %889 = vset.pattern.permute.xlu0 0
      %890 = vperm.xlu0 %889, %v817
      %v891 = vpop.permute.xlu0 %890
      %v894 = vsel %vm588, %v815, 0
      %896 = vmatprep.subr.mxu0 0.0
      %897 = vmatpush1.msra.mxu0 0.0
      %898 = vmatprep.subr.mxu0 0.0
      %899 = vmatpush1.msra.mxu0 0.0
      %900 = vmatprep.subr.mxu0 0.0
      %901 = vmatpush1.msra.mxu0 0.0
      %902 = vmatprep.subr.mxu0 0.0
      %903 = vmatpush1.msra.mxu0 0.0
      %904 = vmatprep.subr.mxu0 0.0
      %905 = vmatpush1.msra.mxu0 0.0
      %906 = vmatprep.subr.mxu0 0.0
      %907 = vmatpush1.msra.mxu0 0.0
      %908 = vmatprep.subr.mxu0 0.0
      %909 = vmatpush1.msra.mxu0 0.0
      %910 = vmatprep.subr.mxu0 0.0
      %911 = vmatpush1.msra.mxu0 %v887
      %912 = vmatprep.subr.mxu0 0.0
      %913 = vmatpush1.msra.mxu0 %v886
      %914 = vmatprep.subr.mxu0 0.0
      %915 = vmatpush1.msra.mxu0 %v885
      %916 = vmatprep.subr.mxu0 0.0
      %917 = vmatpush1.msra.mxu0 %v884
      %918 = vmatprep.subr.mxu0 0.0
      %919 = vmatpush1.msra.mxu0 %v883
      %920 = vmatprep.subr.mxu0 0.0
      %921 = vmatpush1.msra.mxu0 %v882
      %922 = vmatprep.subr.mxu0 0.0
      %923 = vmatpush1.msra.mxu0 %v881
      %924 = vmatprep.subr.mxu0 0.0
      %925 = vmatpush1.msra.mxu0 %v880
      %926 = vmatprep.subr.mxu0 0.0
      %927 = vmatpush1.msra.mxu0 %v879
      %928 = vmatprep.subr.mxu0 0.0
      %929 = vmatpush2.msra.mxu0 0.0
      %930 = vmatprep.subr.mxu0 0.0
      %931 = vmatpush2.msra.mxu0 0.0
      %932 = vmatprep.subr.mxu0 0.0
      %933 = vmatpush2.msra.mxu0 0.0
      %934 = vmatprep.subr.mxu0 0.0
      %935 = vmatpush2.msra.mxu0 0.0
      %936 = vmatprep.subr.mxu0 0.0
      %937 = vmatpush2.msra.mxu0 0.0
      %938 = vmatprep.subr.mxu0 0.0
      %939 = vmatpush2.msra.mxu0 0.0
      %940 = vmatprep.subr.mxu0 0.0
      %941 = vmatpush2.msra.mxu0 0.0
      %942 = vmatprep.subr.mxu0 0.0
      %943 = vmatpush2.msra.mxu0 0.0
      %944 = vmatprep.subr.mxu0 0.0
      %945 = vmatpush2.msra.mxu0 0.0
      %946 = vmatprep.subr.mxu0 0.0
      %947 = vmatpush2.msra.mxu0 0.0
      %948 = vmatprep.subr.mxu0 0.0
      %949 = vmatpush2.msra.mxu0 0.0
      %950 = vmatprep.subr.mxu0 0.0
      %951 = vmatpush2.msra.mxu0 0.0
      %952 = vmatprep.subr.mxu0 0.0
      %953 = vmatpush2.msra.mxu0 0.0
      %954 = vmatprep.subr.mxu0 0.0
      %955 = vmatpush2.msra.mxu0 0.0
      %956 = vmatprep.subr.mxu0 0.0
      %957 = vmatpush2.msra.mxu0 0.0
      %958 = vmatprep.subr.mxu0 0.0
      %959 = vmatpush2.msra.mxu0 0.0
      %960 = vmatprep.mubr.f32.mxu0 0.0
      %961 = vmatmul.mubr.f32.gmra.mxu0 %v894
      %v962 = vpop.f32.mrf.mxu0
      %v963 = vadd.f32 %v891, %v962
      %v964 = vpop.f32.mrf.mxu0
      %965 = vdwg.mxu0
      %v966 = vadd.f32 %v963, %v659
      %s967 = scalar_lea.vmem %s3, 16
      %v968 = vld [vmem:[%s967] sm:$0xff]
      %s969 = scalar_lea.vmem %s4, 16
      %v970 = vld [vmem:[%s969] sm:$0xff]
      %972 = vrot.lane.b32.xlu0 %v966, 9
      %v973 = vpop.permute.xlu0 %972
      %975 = vst.msk [vmem:[#allocation2] sm:$0xff] %vm668, %v973
      %v976 = vld [vmem:[#allocation2] sm:$0xff]
      %v977 = vsel %vm382, %v976, 0.0
      %978 = vst.msk [vmem:[#allocation4] sm:$0xff] %vm338, %v977
      %v979 = vld [vmem:[#allocation2] sm:$0xff]
      %981 = vrot.lane.b32.xlu0 %v979, 127
      %v982 = vpop.permute.xlu0 %981
      %984 = vst.msk [vmem:[#allocation4 + $0x8] sm:$0xff] %vm338, %v982
      %v985 = vld [vmem:[#allocation2] sm:$0xff]
      %987 = vrot.lane.b32.xlu0 %v985, 126
      %v988 = vpop.permute.xlu0 %987
      %v990 = vsel %vm394, %v988, 0.0
      %991 = vst.msk [vmem:[#allocation4 + $0x10] sm:$0xff] %vm338, %v990
      %v992 = vld [vmem:[#allocation2] sm:$0xff]
      %994 = vrot.lane.b32.xlu0 %v992, 120
      %v995 = vpop.permute.xlu0 %994
      %v997 = vsel %vm382, %v995, 0.0
      %998 = vst.msk [vmem:[#allocation4 + $0x18] sm:$0xff] %vm338, %v997
      %v999 = vld [vmem:[#allocation2] sm:$0xff]
      %1001 = vrot.lane.b32.xlu0 %v999, 119
      %v1002 = vpop.permute.xlu0 %1001
      %1004 = vst.msk [vmem:[#allocation4 + $0x20] sm:$0xff] %vm338, %v1002
      %v1005 = vld [vmem:[#allocation2] sm:$0xff]
      %1007 = vrot.lane.b32.xlu0 %v1005, 118
      %v1008 = vpop.permute.xlu0 %1007
      %v1010 = vsel %vm394, %v1008, 0.0
      %1011 = vst.msk [vmem:[#allocation4 + $0x28] sm:$0xff] %vm338, %v1010
      %v1012 = vld [vmem:[#allocation2] sm:$0xff]
      %1014 = vrot.lane.b32.xlu0 %v1012, 112
      %v1015 = vpop.permute.xlu0 %1014
      %v1017 = vsel %vm382, %v1015, 0.0
      %1018 = vst.msk [vmem:[#allocation4 + $0x30] sm:$0xff] %vm338, %v1017
      %v1019 = vld [vmem:[#allocation2] sm:$0xff]
      %1021 = vrot.lane.b32.xlu0 %v1019, 111
      %v1022 = vpop.permute.xlu0 %1021
      %1024 = vst.msk [vmem:[#allocation4 + $0x38] sm:$0xff] %vm338, %v1022
      %v1025 = vld [vmem:[#allocation2] sm:$0xff]
      %1027 = vrot.lane.b32.xlu0 %v1025, 110
      %v1028 = vpop.permute.xlu0 %1027
      %v1030 = vsel %vm394, %v1028, 0.0
      %1031 = vst.msk [vmem:[#allocation4 + $0x40] sm:$0xff] %vm338, %v1030
      %v1032 = vld [vmem:[#allocation4] sm:$0xff]
      %v1033 = vld [vmem:[#allocation4 + $0x8] sm:$0xff]
      %v1034 = vld [vmem:[#allocation4 + $0x10] sm:$0xff]
      %v1035 = vld [vmem:[#allocation4 + $0x18] sm:$0xff]
      %v1036 = vld [vmem:[#allocation4 + $0x20] sm:$0xff]
      %v1037 = vld [vmem:[#allocation4 + $0x28] sm:$0xff]
      %v1038 = vld [vmem:[#allocation4 + $0x30] sm:$0xff]
      %v1039 = vld [vmem:[#allocation4 + $0x38] sm:$0xff]
      %v1040 = vld [vmem:[#allocation4 + $0x40] sm:$0xff]
      %1042 = vset.pattern.permute.xlu0 0
      %1043 = vperm.xlu0 %1042, %v970
      %v1044 = vpop.permute.xlu0 %1043
      %v1047 = vsel %vm588, %v968, 0
      %1049 = vmatprep.subr.mxu0 0.0
      %1050 = vmatpush1.msra.mxu0 0.0
      %1051 = vmatprep.subr.mxu0 0.0
      %1052 = vmatpush1.msra.mxu0 0.0
      %1053 = vmatprep.subr.mxu0 0.0
      %1054 = vmatpush1.msra.mxu0 0.0
      %1055 = vmatprep.subr.mxu0 0.0
      %1056 = vmatpush1.msra.mxu0 0.0
      %1057 = vmatprep.subr.mxu0 0.0
      %1058 = vmatpush1.msra.mxu0 0.0
      %1059 = vmatprep.subr.mxu0 0.0
      %1060 = vmatpush1.msra.mxu0 0.0
      %1061 = vmatprep.subr.mxu0 0.0
      %1062 = vmatpush1.msra.mxu0 0.0
      %1063 = vmatprep.subr.mxu0 0.0
      %1064 = vmatpush1.msra.mxu0 %v1040
      %1065 = vmatprep.subr.mxu0 0.0
      %1066 = vmatpush1.msra.mxu0 %v1039
      %1067 = vmatprep.subr.mxu0 0.0
      %1068 = vmatpush1.msra.mxu0 %v1038
      %1069 = vmatprep.subr.mxu0 0.0
      %1070 = vmatpush1.msra.mxu0 %v1037
      %1071 = vmatprep.subr.mxu0 0.0
      %1072 = vmatpush1.msra.mxu0 %v1036
      %1073 = vmatprep.subr.mxu0 0.0
      %1074 = vmatpush1.msra.mxu0 %v1035
      %1075 = vmatprep.subr.mxu0 0.0
      %1076 = vmatpush1.msra.mxu0 %v1034
      %1077 = vmatprep.subr.mxu0 0.0
      %1078 = vmatpush1.msra.mxu0 %v1033
      %1079 = vmatprep.subr.mxu0 0.0
      %1080 = vmatpush1.msra.mxu0 %v1032
      %1081 = vmatprep.subr.mxu0 0.0
      %1082 = vmatpush2.msra.mxu0 0.0
      %1083 = vmatprep.subr.mxu0 0.0
      %1084 = vmatpush2.msra.mxu0 0.0
      %1085 = vmatprep.subr.mxu0 0.0
      %1086 = vmatpush2.msra.mxu0 0.0
      %1087 = vmatprep.subr.mxu0 0.0
      %1088 = vmatpush2.msra.mxu0 0.0
      %1089 = vmatprep.subr.mxu0 0.0
      %1090 = vmatpush2.msra.mxu0 0.0
      %1091 = vmatprep.subr.mxu0 0.0
      %1092 = vmatpush2.msra.mxu0 0.0
      %1093 = vmatprep.subr.mxu0 0.0
      %1094 = vmatpush2.msra.mxu0 0.0
      %1095 = vmatprep.subr.mxu0 0.0
      %1096 = vmatpush2.msra.mxu0 0.0
      %1097 = vmatprep.subr.mxu0 0.0
      %1098 = vmatpush2.msra.mxu0 0.0
      %1099 = vmatprep.subr.mxu0 0.0
      %1100 = vmatpush2.msra.mxu0 0.0
      %1101 = vmatprep.subr.mxu0 0.0
      %1102 = vmatpush2.msra.mxu0 0.0
      %1103 = vmatprep.subr.mxu0 0.0
      %1104 = vmatpush2.msra.mxu0 0.0
      %1105 = vmatprep.subr.mxu0 0.0
      %1106 = vmatpush2.msra.mxu0 0.0
      %1107 = vmatprep.subr.mxu0 0.0
      %1108 = vmatpush2.msra.mxu0 0.0
      %1109 = vmatprep.subr.mxu0 0.0
      %1110 = vmatpush2.msra.mxu0 0.0
      %1111 = vmatprep.subr.mxu0 0.0
      %1112 = vmatpush2.msra.mxu0 0.0
      %1113 = vmatprep.mubr.f32.mxu0 0.0
      %1114 = vmatmul.mubr.f32.gmra.mxu0 %v1047
      %v1115 = vpop.f32.mrf.mxu0
      %v1116 = vadd.f32 %v1044, %v1115
      %v1117 = vpop.f32.mrf.mxu0
      %1118 = vdwg.mxu0
      %v1119 = vmax.f32 %v1116, 0.0
      %s1120 = scalar_lea.vmem %s3, 24
      %v1121 = vld [vmem:[%s1120] sm:$0xff]
      %s1122 = scalar_lea.vmem %s4, 24
      %v1123 = vld [vmem:[%s1122] sm:$0xff]
      %1125 = vrot.lane.b32.xlu0 %v1119, 9
      %v1126 = vpop.permute.xlu0 %1125
      %1128 = vst.msk [vmem:[#allocation2] sm:$0xff] %vm668, %v1126
      %v1129 = vld [vmem:[#allocation2] sm:$0xff]
      %v1130 = vsel %vm382, %v1129, 0.0
      %1131 = vst.msk [vmem:[#allocation4] sm:$0xff] %vm338, %v1130
      %v1132 = vld [vmem:[#allocation2] sm:$0xff]
      %1134 = vrot.lane.b32.xlu0 %v1132, 127
      %v1135 = vpop.permute.xlu0 %1134
      %1137 = vst.msk [vmem:[#allocation4 + $0x8] sm:$0xff] %vm338, %v1135
      %v1138 = vld [vmem:[#allocation2] sm:$0xff]
      %1140 = vrot.lane.b32.xlu0 %v1138, 126
      %v1141 = vpop.permute.xlu0 %1140
      %v1143 = vsel %vm394, %v1141, 0.0
      %1144 = vst.msk [vmem:[#allocation4 + $0x10] sm:$0xff] %vm338, %v1143
      %v1145 = vld [vmem:[#allocation2] sm:$0xff]
      %1147 = vrot.lane.b32.xlu0 %v1145, 120
      %v1148 = vpop.permute.xlu0 %1147
      %v1150 = vsel %vm382, %v1148, 0.0
      %1151 = vst.msk [vmem:[#allocation4 + $0x18] sm:$0xff] %vm338, %v1150
      %v1152 = vld [vmem:[#allocation2] sm:$0xff]
      %1154 = vrot.lane.b32.xlu0 %v1152, 119
      %v1155 = vpop.permute.xlu0 %1154
      %1157 = vst.msk [vmem:[#allocation4 + $0x20] sm:$0xff] %vm338, %v1155
      %v1158 = vld [vmem:[#allocation2] sm:$0xff]
      %1160 = vrot.lane.b32.xlu0 %v1158, 118
      %v1161 = vpop.permute.xlu0 %1160
      %v1163 = vsel %vm394, %v1161, 0.0
      %1164 = vst.msk [vmem:[#allocation4 + $0x28] sm:$0xff] %vm338, %v1163
      %v1165 = vld [vmem:[#allocation2] sm:$0xff]
      %1167 = vrot.lane.b32.xlu0 %v1165, 112
      %v1168 = vpop.permute.xlu0 %1167
      %v1170 = vsel %vm382, %v1168, 0.0
      %1171 = vst.msk [vmem:[#allocation4 + $0x30] sm:$0xff] %vm338, %v1170
      %v1172 = vld [vmem:[#allocation2] sm:$0xff]
      %1174 = vrot.lane.b32.xlu0 %v1172, 111
      %v1175 = vpop.permute.xlu0 %1174
      %1177 = vst.msk [vmem:[#allocation4 + $0x38] sm:$0xff] %vm338, %v1175
      %v1178 = vld [vmem:[#allocation2] sm:$0xff]
      %1180 = vrot.lane.b32.xlu0 %v1178, 110
      %v1181 = vpop.permute.xlu0 %1180
      %v1183 = vsel %vm394, %v1181, 0.0
      %1184 = vst.msk [vmem:[#allocation4 + $0x40] sm:$0xff] %vm338, %v1183
      %v1185 = vld [vmem:[#allocation4] sm:$0xff]
      %v1186 = vld [vmem:[#allocation4 + $0x8] sm:$0xff]
      %v1187 = vld [vmem:[#allocation4 + $0x10] sm:$0xff]
      %v1188 = vld [vmem:[#allocation4 + $0x18] sm:$0xff]
      %v1189 = vld [vmem:[#allocation4 + $0x20] sm:$0xff]
      %v1190 = vld [vmem:[#allocation4 + $0x28] sm:$0xff]
      %v1191 = vld [vmem:[#allocation4 + $0x30] sm:$0xff]
      %v1192 = vld [vmem:[#allocation4 + $0x38] sm:$0xff]
      %v1193 = vld [vmem:[#allocation4 + $0x40] sm:$0xff]
      %1195 = vset.pattern.permute.xlu0 0
      %1196 = vperm.xlu0 %1195, %v1123
      %v1197 = vpop.permute.xlu0 %1196
      %v1200 = vsel %vm588, %v1121, 0
      %1202 = vmatprep.subr.mxu0 0.0
      %1203 = vmatpush1.msra.mxu0 0.0
      %1204 = vmatprep.subr.mxu0 0.0
      %1205 = vmatpush1.msra.mxu0 0.0
      %1206 = vmatprep.subr.mxu0 0.0
      %1207 = vmatpush1.msra.mxu0 0.0
      %1208 = vmatprep.subr.mxu0 0.0
      %1209 = vmatpush1.msra.mxu0 0.0
      %1210 = vmatprep.subr.mxu0 0.0
      %1211 = vmatpush1.msra.mxu0 0.0
      %1212 = vmatprep.subr.mxu0 0.0
      %1213 = vmatpush1.msra.mxu0 0.0
      %1214 = vmatprep.subr.mxu0 0.0
      %1215 = vmatpush1.msra.mxu0 0.0
      %1216 = vmatprep.subr.mxu0 0.0
      %1217 = vmatpush1.msra.mxu0 %v1193
      %1218 = vmatprep.subr.mxu0 0.0
      %1219 = vmatpush1.msra.mxu0 %v1192
      %1220 = vmatprep.subr.mxu0 0.0
      %1221 = vmatpush1.msra.mxu0 %v1191
      %1222 = vmatprep.subr.mxu0 0.0
      %1223 = vmatpush1.msra.mxu0 %v1190
      %1224 = vmatprep.subr.mxu0 0.0
      %1225 = vmatpush1.msra.mxu0 %v1189
      %1226 = vmatprep.subr.mxu0 0.0
      %1227 = vmatpush1.msra.mxu0 %v1188
      %1228 = vmatprep.subr.mxu0 0.0
      %1229 = vmatpush1.msra.mxu0 %v1187
      %1230 = vmatprep.subr.mxu0 0.0
      %1231 = vmatpush1.msra.mxu0 %v1186
      %1232 = vmatprep.subr.mxu0 0.0
      %1233 = vmatpush1.msra.mxu0 %v1185
      %1234 = vmatprep.subr.mxu0 0.0
      %1235 = vmatpush2.msra.mxu0 0.0
      %1236 = vmatprep.subr.mxu0 0.0
      %1237 = vmatpush2.msra.mxu0 0.0
      %1238 = vmatprep.subr.mxu0 0.0
      %1239 = vmatpush2.msra.mxu0 0.0
      %1240 = vmatprep.subr.mxu0 0.0
      %1241 = vmatpush2.msra.mxu0 0.0
      %1242 = vmatprep.subr.mxu0 0.0
      %1243 = vmatpush2.msra.mxu0 0.0
      %1244 = vmatprep.subr.mxu0 0.0
      %1245 = vmatpush2.msra.mxu0 0.0
      %1246 = vmatprep.subr.mxu0 0.0
      %1247 = vmatpush2.msra.mxu0 0.0
      %1248 = vmatprep.subr.mxu0 0.0
      %1249 = vmatpush2.msra.mxu0 0.0
      %1250 = vmatprep.subr.mxu0 0.0
      %1251 = vmatpush2.msra.mxu0 0.0
      %1252 = vmatprep.subr.mxu0 0.0
      %1253 = vmatpush2.msra.mxu0 0.0
      %1254 = vmatprep.subr.mxu0 0.0
      %1255 = vmatpush2.msra.mxu0 0.0
      %1256 = vmatprep.subr.mxu0 0.0
      %1257 = vmatpush2.msra.mxu0 0.0
      %1258 = vmatprep.subr.mxu0 0.0
      %1259 = vmatpush2.msra.mxu0 0.0
      %1260 = vmatprep.subr.mxu0 0.0
      %1261 = vmatpush2.msra.mxu0 0.0
      %1262 = vmatprep.subr.mxu0 0.0
      %1263 = vmatpush2.msra.mxu0 0.0
      %1264 = vmatprep.subr.mxu0 0.0
      %1265 = vmatpush2.msra.mxu0 0.0
      %1266 = vmatprep.mubr.f32.mxu0 0.0
      %1267 = vmatmul.mubr.f32.gmra.mxu0 %v1200
      %v1268 = vpop.f32.mrf.mxu0
      %v1269 = vadd.f32 %v1197, %v1268
      %v1270 = vpop.f32.mrf.mxu0
      %1271 = vdwg.mxu0
      %v1272 = vadd.f32 %v1269, %v966
      %v1273 = vld [vmem:[%s5] sm:$0xff]
      %v1274 = vld [vmem:[%s6] sm:$0xff]
      %1276 = vrot.lane.b32.xlu0 %v1272, 9
      %v1277 = vpop.permute.xlu0 %1276
      %1279 = vst.msk [vmem:[#allocation2] sm:$0xff] %vm668, %v1277
      %v1280 = vld [vmem:[#allocation2] sm:$0xff]
      %v1281 = vsel %vm382, %v1280, 0.0
      %1282 = vst.msk [vmem:[#allocation4] sm:$0xff] %vm338, %v1281
      %v1283 = vld [vmem:[#allocation2] sm:$0xff]
      %1285 = vrot.lane.b32.xlu0 %v1283, 127
      %v1286 = vpop.permute.xlu0 %1285
      %1288 = vst.msk [vmem:[#allocation4 + $0x8] sm:$0xff] %vm338, %v1286
      %v1289 = vld [vmem:[#allocation2] sm:$0xff]
      %1291 = vrot.lane.b32.xlu0 %v1289, 126
      %v1292 = vpop.permute.xlu0 %1291
      %v1294 = vsel %vm394, %v1292, 0.0
      %1295 = vst.msk [vmem:[#allocation4 + $0x10] sm:$0xff] %vm338, %v1294
      %v1296 = vld [vmem:[#allocation2] sm:$0xff]
      %1298 = vrot.lane.b32.xlu0 %v1296, 120
      %v1299 = vpop.permute.xlu0 %1298
      %v1301 = vsel %vm382, %v1299, 0.0
      %1302 = vst.msk [vmem:[#allocation4 + $0x18] sm:$0xff] %vm338, %v1301
      %v1303 = vld [vmem:[#allocation2] sm:$0xff]
      %1305 = vrot.lane.b32.xlu0 %v1303, 119
      %v1306 = vpop.permute.xlu0 %1305
      %1308 = vst.msk [vmem:[#allocation4 + $0x20] sm:$0xff] %vm338, %v1306
      %v1309 = vld [vmem:[#allocation2] sm:$0xff]
      %1311 = vrot.lane.b32.xlu0 %v1309, 118
      %v1312 = vpop.permute.xlu0 %1311
      %v1314 = vsel %vm394, %v1312, 0.0
      %1315 = vst.msk [vmem:[#allocation4 + $0x28] sm:$0xff] %vm338, %v1314
      %v1316 = vld [vmem:[#allocation2] sm:$0xff]
      %1318 = vrot.lane.b32.xlu0 %v1316, 112
      %v1319 = vpop.permute.xlu0 %1318
      %v1321 = vsel %vm382, %v1319, 0.0
      %1322 = vst.msk [vmem:[#allocation4 + $0x30] sm:$0xff] %vm338, %v1321
      %v1323 = vld [vmem:[#allocation2] sm:$0xff]
      %1325 = vrot.lane.b32.xlu0 %v1323, 111
      %v1326 = vpop.permute.xlu0 %1325
      %1328 = vst.msk [vmem:[#allocation4 + $0x38] sm:$0xff] %vm338, %v1326
      %v1329 = vld [vmem:[#allocation2] sm:$0xff]
      %1331 = vrot.lane.b32.xlu0 %v1329, 110
      %v1332 = vpop.permute.xlu0 %1331
      %v1334 = vsel %vm394, %v1332, 0.0
      %1335 = vst.msk [vmem:[#allocation4 + $0x40] sm:$0xff] %vm338, %v1334
      %v1336 = vld [vmem:[#allocation4] sm:$0xff]
      %v1337 = vld [vmem:[#allocation4 + $0x8] sm:$0xff]
      %v1338 = vld [vmem:[#allocation4 + $0x10] sm:$0xff]
      %v1339 = vld [vmem:[#allocation4 + $0x18] sm:$0xff]
      %v1340 = vld [vmem:[#allocation4 + $0x20] sm:$0xff]
      %v1341 = vld [vmem:[#allocation4 + $0x28] sm:$0xff]
      %v1342 = vld [vmem:[#allocation4 + $0x30] sm:$0xff]
      %v1343 = vld [vmem:[#allocation4 + $0x38] sm:$0xff]
      %v1344 = vld [vmem:[#allocation4 + $0x40] sm:$0xff]
      %1346 = vset.pattern.permute.xlu0 0
      %1347 = vperm.xlu0 %1346, %v1274
      %v1348 = vpop.permute.xlu0 %1347
      %v1351 = vsel %vm588, %v1273, 0
      %1353 = vmatprep.subr.mxu0 0.0
      %1354 = vmatpush1.msra.mxu0 0.0
      %1355 = vmatprep.subr.mxu0 0.0
      %1356 = vmatpush1.msra.mxu0 0.0
      %1357 = vmatprep.subr.mxu0 0.0
      %1358 = vmatpush1.msra.mxu0 0.0
      %1359 = vmatprep.subr.mxu0 0.0
      %1360 = vmatpush1.msra.mxu0 0.0
      %1361 = vmatprep.subr.mxu0 0.0
      %1362 = vmatpush1.msra.mxu0 0.0
      %1363 = vmatprep.subr.mxu0 0.0
      %1364 = vmatpush1.msra.mxu0 0.0
      %1365 = vmatprep.subr.mxu0 0.0
      %1366 = vmatpush1.msra.mxu0 0.0
      %1367 = vmatprep.subr.mxu0 0.0
      %1368 = vmatpush1.msra.mxu0 %v1344
      %1369 = vmatprep.subr.mxu0 0.0
      %1370 = vmatpush1.msra.mxu0 %v1343
      %1371 = vmatprep.subr.mxu0 0.0
      %1372 = vmatpush1.msra.mxu0 %v1342
      %1373 = vmatprep.subr.mxu0 0.0
      %1374 = vmatpush1.msra.mxu0 %v1341
      %1375 = vmatprep.subr.mxu0 0.0
      %1376 = vmatpush1.msra.mxu0 %v1340
      %1377 = vmatprep.subr.mxu0 0.0
      %1378 = vmatpush1.msra.mxu0 %v1339
      %1379 = vmatprep.subr.mxu0 0.0
      %1380 = vmatpush1.msra.mxu0 %v1338
      %1381 = vmatprep.subr.mxu0 0.0
      %1382 = vmatpush1.msra.mxu0 %v1337
      %1383 = vmatprep.subr.mxu0 0.0
      %1384 = vmatpush1.msra.mxu0 %v1336
      %1385 = vmatprep.subr.mxu0 0.0
      %1386 = vmatpush2.msra.mxu0 0.0
      %1387 = vmatprep.subr.mxu0 0.0
      %1388 = vmatpush2.msra.mxu0 0.0
      %1389 = vmatprep.subr.mxu0 0.0
      %1390 = vmatpush2.msra.mxu0 0.0
      %1391 = vmatprep.subr.mxu0 0.0
      %1392 = vmatpush2.msra.mxu0 0.0
      %1393 = vmatprep.subr.mxu0 0.0
      %1394 = vmatpush2.msra.mxu0 0.0
      %1395 = vmatprep.subr.mxu0 0.0
      %1396 = vmatpush2.msra.mxu0 0.0
      %1397 = vmatprep.subr.mxu0 0.0
      %1398 = vmatpush2.msra.mxu0 0.0
      %1399 = vmatprep.subr.mxu0 0.0
      %1400 = vmatpush2.msra.mxu0 0.0
      %1401 = vmatprep.subr.mxu0 0.0
      %1402 = vmatpush2.msra.mxu0 0.0
      %1403 = vmatprep.subr.mxu0 0.0
      %1404 = vmatpush2.msra.mxu0 0.0
      %1405 = vmatprep.subr.mxu0 0.0
      %1406 = vmatpush2.msra.mxu0 0.0
      %1407 = vmatprep.subr.mxu0 0.0
      %1408 = vmatpush2.msra.mxu0 0.0
      %1409 = vmatprep.subr.mxu0 0.0
      %1410 = vmatpush2.msra.mxu0 0.0
      %1411 = vmatprep.subr.mxu0 0.0
      %1412 = vmatpush2.msra.mxu0 0.0
      %1413 = vmatprep.subr.mxu0 0.0
      %1414 = vmatpush2.msra.mxu0 0.0
      %1415 = vmatprep.subr.mxu0 0.0
      %1416 = vmatpush2.msra.mxu0 0.0
      %1417 = vmatprep.mubr.f32.mxu0 0.0
      %1418 = vmatmul.mubr.f32.gmra.mxu0 %v1351
      %v1419 = vpop.f32.mrf.mxu0
      %v1420 = vadd.f32 %v1348, %v1419
      %v1421 = vpop.f32.mrf.mxu0
      %1422 = vdwg.mxu0
      %v1423 = vadd.f32 %v1420, %v659
      %v1424 = vld [vmem:[%s7] sm:$0xf]
      %v1425 = vld [vmem:[%s8] sm:$0xf]
      %1427 = vset.pattern.permute.xlu0 0
      %1428 = vperm.xlu0 %1427, %v1425
      %v1429 = vpop.permute.xlu0 %1428
      %vm1431 = vcmask 64512
      %v1433 = vsel %vm1431, %v1424, 0
      %1435 = vmatprep.subr.mxu0 0.0
      %1436 = vmatpush1.msra.mxu0 0.0
      %1437 = vmatprep.subr.mxu0 0.0
      %1438 = vmatpush1.msra.mxu0 0.0
      %1439 = vmatprep.subr.mxu0 0.0
      %1440 = vmatpush1.msra.mxu0 0.0
      %1441 = vmatprep.subr.mxu0 0.0
      %1442 = vmatpush1.msra.mxu0 0.0
      %1443 = vmatprep.subr.mxu0 0.0
      %1444 = vmatpush1.msra.mxu0 0.0
      %1445 = vmatprep.subr.mxu0 0.0
      %1446 = vmatpush1.msra.mxu0 0.0
      %1447 = vmatprep.subr.mxu0 0.0
      %1448 = vmatpush1.msra.mxu0 0.0
      %1449 = vmatprep.subr.mxu0 0.0
      %1450 = vmatpush1.msra.mxu0 0.0
      %1451 = vmatprep.subr.mxu0 0.0
      %1452 = vmatpush1.msra.mxu0 0.0
      %1453 = vmatprep.subr.mxu0 0.0
      %1454 = vmatpush1.msra.mxu0 0.0
      %1455 = vmatprep.subr.mxu0 0.0
      %1456 = vmatpush1.msra.mxu0 0.0
      %1457 = vmatprep.subr.mxu0 0.0
      %1458 = vmatpush1.msra.mxu0 0.0
      %1459 = vmatprep.subr.mxu0 0.0
      %1460 = vmatpush1.msra.mxu0 0.0
      %1461 = vmatprep.subr.mxu0 0.0
      %1462 = vmatpush1.msra.mxu0 0.0
      %1463 = vmatprep.subr.mxu0 0.0
      %1464 = vmatpush1.msra.mxu0 0.0
      %1465 = vmatprep.subr.mxu0 0.0
      %1466 = vmatpush1.msra.mxu0 %v1423
      %1467 = vmatprep.subr.mxu0 0.0
      %1468 = vmatpush2.msra.mxu0 0.0
      %1469 = vmatprep.subr.mxu0 0.0
      %1470 = vmatpush2.msra.mxu0 0.0
      %1471 = vmatprep.subr.mxu0 0.0
      %1472 = vmatpush2.msra.mxu0 0.0
      %1473 = vmatprep.subr.mxu0 0.0
      %1474 = vmatpush2.msra.mxu0 0.0
      %1475 = vmatprep.subr.mxu0 0.0
      %1476 = vmatpush2.msra.mxu0 0.0
      %1477 = vmatprep.subr.mxu0 0.0
      %1478 = vmatpush2.msra.mxu0 0.0
      %1479 = vmatprep.subr.mxu0 0.0
      %1480 = vmatpush2.msra.mxu0 0.0
      %1481 = vmatprep.subr.mxu0 0.0
      %1482 = vmatpush2.msra.mxu0 0.0
      %1483 = vmatprep.subr.mxu0 0.0
      %1484 = vmatpush2.msra.mxu0 0.0
      %1485 = vmatprep.subr.mxu0 0.0
      %1486 = vmatpush2.msra.mxu0 0.0
      %1487 = vmatprep.subr.mxu0 0.0
      %1488 = vmatpush2.msra.mxu0 0.0
      %1489 = vmatprep.subr.mxu0 0.0
      %1490 = vmatpush2.msra.mxu0 0.0
      %1491 = vmatprep.subr.mxu0 0.0
      %1492 = vmatpush2.msra.mxu0 0.0
      %1493 = vmatprep.subr.mxu0 0.0
      %1494 = vmatpush2.msra.mxu0 0.0
      %1495 = vmatprep.subr.mxu0 0.0
      %1496 = vmatpush2.msra.mxu0 0.0
      %1497 = vmatprep.subr.mxu0 0.0
      %1498 = vmatpush2.msra.mxu0 0.0
      %1499 = vmatprep.mubr.f32.mxu0 0.0
      %1500 = vmatmul.mubr.f32.gmra.mxu0 %v1433
      %v1501 = vpop.f32.mrf.mxu0
      %v1502 = vadd.f32 %v1429, %v1501
      %v1503 = vpop.f32.mrf.mxu0
      %1504 = vdwg.mxu0
      %1505 = vst.msk [vmem:[%s330] sm:$0xf] %vm384, %v1502
      %p1506 = scmp.lt.s32.totalorder %s20, 1
      %s1507 = scalar_select %p1506, %s20, 1
      %s1508 = smul.addr %s1507, 4
      %s1509 = scalar_lea.vmem %s9, %s1508
      // Predicated region
      $region57: #{enc_unit_last_pallas.1} parent=55 // pred_check
        %p1510 = pneg %p232
      $region58: #{enc_unit_last_pallas.1} parent=55 // pred_check_branch
        %1512 = sbr.rel (%p1510) target = $region60
      $region59: #{enc_unit_last_pallas.1} parent=55 // pred_region
        _
      $region60: #{enc_unit_last_pallas.1} parent=55 // pred_fallthru
        _
    $region56: #{enc_unit_last_pallas.1} parent=5 // pred_fallthru
      _
    %p1513 = scmp.le.s32.totalorder 2, %s15
    // Predicated region
    $region61: #{enc_unit_last_pallas.1} parent=5 // pred_check
      %p1514 = pneg %p1513
    $region62: #{enc_unit_last_pallas.1} parent=5 // pred_check_branch
      %1516 = sbr.rel (%p1514) target = $region64
    $region63: #{enc_unit_last_pallas.1} parent=5 // pred_region
      %s1517 = ssub.s32 %s15, 2
      // Predicated region
      $region65: #{enc_unit_last_pallas.1} parent=63 // pred_check
        %p1518 = pneg %p238
      $region66: #{enc_unit_last_pallas.1} parent=63 // pred_check_branch
        %1520 = sbr.rel (%p1518) target = $region68
      $region67: #{enc_unit_last_pallas.1} parent=63 // pred_region
        %p1521 = scmp.lt.s32.totalorder %s21, 1
        %s1522 = scalar_select %p1521, %s21, 1
        %s1523 = smul.addr %s1522, 4
        %s1524 = scalar_lea.vmem %s9, %s1523
      $region68: #{enc_unit_last_pallas.1} parent=63 // pred_fallthru
        _
    $region64: #{enc_unit_last_pallas.1} parent=5 // pred_fallthru
      _
  $region6: #{enc_unit_last_pallas.1} parent=0 // loop_footer
    %s19 = sadd.s32 1, %s15
  $region7: #{enc_unit_last_pallas.1} parent=0 // loop_footer_branch
    %14 = sbr.rel target = $region3
  $region8: #{enc_unit_last_pallas.1} parent=0 // loop_exit
    _

</llo_original>
